<compile_context>
chip_gen: v6e
topology: v6e:2x2x1
jax: 0.10.0
libtpu: 0.0.40
codegen_flags: <defaults>
</compile_context>

<pallas_src>
import functools
import math

import jax
import jax.numpy as jnp
from jax import lax
from jax.experimental import pallas as pl
from jax.experimental.pallas import tpu as pltpu


# Order of the constant (parameter) operands handed to the kernel.
_PARAM_ORDER = ("wq", "wk", "wv", "bq", "bk", "bv", "wo", "bo",
                "w1", "b1", "w2", "b2", "ln1_g", "ln1_b", "ln2_g", "ln2_b")


def encoder_layer_kernel(x_ref,
                         wq_ref, wk_ref, wv_ref, bq_ref, bk_ref, bv_ref,
                         wo_ref, bo_ref,
                         w1_ref, fb1_ref, w2_ref, fb2_ref,
                         g1_ref, be1_ref, g2_ref, be2_ref,
                         o_ref, *, nhead, approx_recip):
    Bt, S, E = x_ref.shape
    H = nhead
    Dh = E // H
    N = Bt * S
    scale = 1.0 / math.sqrt(Dh)
    cdt = w1_ref.dtype                        # compute dtype for MXU inputs (f32/bf16)

    x2 = x_ref[...].reshape(N, E)             # (Bt*S, E) token rows
    x_f32 = x2.astype(jnp.float32)            # residual path stays f32
    xc = x2.astype(cdt)

    def mm(a, b):                             # (n, i) @ (i, o) -> f32 accumulate
        return lax.dot_general(a, b, (((1,), (0,)), ((), ())),
                               preferred_element_type=jnp.float32)

    # ------------------------- multi-head self attention -------------------------
    # Full-width projections: one layout-native (N, E) @ (E, E) matmul each.
    q = ((mm(xc, wq_ref[...]) + bq_ref[...]) * scale).astype(cdt)    # (N, E)
    k = (mm(xc, wk_ref[...]) + bk_ref[...]).astype(cdt)              # (N, E)
    v = (mm(xc, wv_ref[...]) + bv_ref[...]).astype(cdt)              # (N, E)

    wo = wo_ref[...]                          # (E, E): rows = head-concat input dim

    per_batch = []
    for b in range(Bt):                       # tokens of different batch elements
        rs = slice(b * S, (b + 1) * S)        # must not attend to each other
        ctx = jnp.zeros((S, E), jnp.float32)
        for h in range(H):
            cs = slice(h * Dh, (h + 1) * Dh)  # static per-head lane slice
            qh = q[rs, cs]
            kh = k[rs, cs]
            vh = v[rs, cs]
            s = lax.dot_general(qh, kh, (((1,), (1,)), ((), ())),
                                preferred_element_type=jnp.float32)   # (S, S)
            s = s - jnp.max(s, axis=-1, keepdims=True)
            p = jnp.exp(s)
            p = p * pl.reciprocal(jnp.sum(p, axis=-1, keepdims=True),
                                  approx=approx_recip)
            oh = mm(p.astype(cdt), vh)                                # (S, Dh)
            # Fold the output projection per head and accumulate over heads --
            # replaces the head concatenate (pure cross-lane traffic) with MXU work.
            ctx = ctx + mm(oh.astype(cdt), wo[cs, :])                 # (S, E)
        per_batch.append(ctx)
    attn = per_batch[0] if Bt == 1 else jnp.concatenate(per_batch, axis=0)
    attn = attn + bo_ref[...]                 # out_proj bias (1, E)

    # --------------- residual + LayerNorm1 (dropout1 == identity) ---------------
    y = x_f32 + attn
    mu = jnp.mean(y, axis=-1, keepdims=True)
    yc = y - mu
    var = jnp.mean(yc * yc, axis=-1, keepdims=True)
    y = yc * lax.rsqrt(var + 1e-5) * g1_ref[...] + be1_ref[...]

    # ------------------- feed-forward (dropout == identity) --------------------
    h1 = jnp.maximum(mm(y.astype(cdt), w1_ref[...]) + fb1_ref[...], 0.0)   # (N, F)
    ffn = mm(h1.astype(cdt), w2_ref[...]) + fb2_ref[...]                   # (N, E)

    # --------------- residual + LayerNorm2 (dropout2 == identity) ---------------
    z = y + ffn
    mu2 = jnp.mean(z, axis=-1, keepdims=True)
    zc = z - mu2
    var2 = jnp.mean(zc * zc, axis=-1, keepdims=True)
    z = zc * lax.rsqrt(var2 + 1e-5) * g2_ref[...] + be2_ref[...]

    o_ref[...] = z.reshape(Bt, S, E).astype(o_ref.dtype)


def prepare_kernel_params(params, compute_dtype):
    """Convert PyTorch-layout parameters ((out, in) weights, 1-D biases) into
    kernel-friendly (in, out) layouts so every in-kernel matmul contracts dim 0
    of the RHS (layout-native MXU pushes, no per-tile weight transposes)."""
    E = params["out_w"].shape[0]
    Fd = params["w1"].shape[0]
    cdt = compute_dtype
    in_w = params["in_w"]                         # (3E, E): rows = outputs (PyTorch)
    in_b = params["in_b"].reshape(3 * E)

    return {
        "wq": jnp.transpose(in_w[0 * E:1 * E]).astype(cdt),   # (E, E)
        "wk": jnp.transpose(in_w[1 * E:2 * E]).astype(cdt),
        "wv": jnp.transpose(in_w[2 * E:3 * E]).astype(cdt),
        "bq": in_b[0 * E:1 * E].reshape(1, E).astype(jnp.float32),
        "bk": in_b[1 * E:2 * E].reshape(1, E).astype(jnp.float32),
        "bv": in_b[2 * E:3 * E].reshape(1, E).astype(jnp.float32),
        "wo": jnp.transpose(params["out_w"]).astype(cdt),     # (E_concat, E)
        "bo": params["out_b"].reshape(1, E).astype(jnp.float32),
        "w1": jnp.transpose(params["w1"]).astype(cdt),        # (E, Fd)
        "b1": params["b1"].reshape(1, Fd).astype(jnp.float32),
        "w2": jnp.transpose(params["w2"]).astype(cdt),        # (Fd, E)
        "b2": params["b2"].reshape(1, E).astype(jnp.float32),
        "ln1_g": params["ln1_g"].reshape(1, E).astype(jnp.float32),
        "ln1_b": params["ln1_b"].reshape(1, E).astype(jnp.float32),
        "ln2_g": params["ln2_g"].reshape(1, E).astype(jnp.float32),
        "ln2_b": params["ln2_b"].reshape(1, E).astype(jnp.float32),
    }


def _pick_block_batch(B):
    """Largest divisor of B that is <= 8 while keeping >= 2 grid steps when B >= 2
    (keeps both TensorCores busy on v7x while still batching rows per step)."""
    for bt in range(min(8, max(1, B // 2)), 0, -1):
        if B % bt == 0:
            return bt
    return 1


@functools.partial(jax.jit, static_argnums=(2,),
                   static_argnames=("compute_dtype", "approx_recip", "block_batch"))
def transformer_encoder_layer(src, params, nhead, *, compute_dtype=jnp.float32,
                              approx_recip=True, block_batch=None):
    """src: (seq, batch, embed) -> (seq, batch, embed)."""
    S, B, E = src.shape
    assert E % nhead == 0
    x = jnp.transpose(src, (1, 0, 2))                       # (B, S, E)
    kp = prepare_kernel_params(params, compute_dtype)
    weights = [kp[name] for name in _PARAM_ORDER]

    Bt = block_batch if block_batch is not None else _pick_block_batch(B)
    assert B % Bt == 0
    nb = B // Bt

    kernel = functools.partial(encoder_layer_kernel, nhead=nhead,
                               approx_recip=approx_recip)

    def const_spec(arr):
        zeros = (0,) * arr.ndim                             # same block every step
        return pl.BlockSpec(arr.shape, lambda i: zeros)

    in_specs = ([pl.BlockSpec((Bt, S, E), lambda i: (i, 0, 0))] +
                [const_spec(w) for w in weights])

    out = pl.pallas_call(
        kernel,
        out_shape=jax.ShapeDtypeStruct((B, S, E), src.dtype),
        grid=(nb,),
        in_specs=in_specs,
        out_specs=pl.BlockSpec((Bt, S, E), lambda i: (i, 0, 0)),
        compiler_params=pltpu.CompilerParams(
            dimension_semantics=("parallel",),
            vmem_limit_bytes=48 * 1024 * 1024,              # stays under v7x's 64 MiB
        ),
    )(x, *weights)
    return jnp.transpose(out, (1, 0, 2))                    # back to (S, B, E)


def reference(src, params, nhead):
    """Pure-JAX reference matching PyTorch eval-mode semantics."""
    S, B, E = src.shape
    Dh = E // nhead
    x = jnp.transpose(src, (1, 0, 2))
    qkv = jnp.einsum("bse,fe->bsf", x, params["in_w"]) + params["in_b"]
    q, k, v = qkv[..., :E], qkv[..., E:2 * E], qkv[..., 2 * E:]

    def split(t):
        return t.reshape(B, S, nhead, Dh).transpose(0, 2, 1, 3)

    q, k, v = split(q), split(k), split(v)
    s = jnp.einsum("bhsd,bhtd->bhst", q, k) / math.sqrt(Dh)
    p = jax.nn.softmax(s, axis=-1)
    a = jnp.einsum("bhst,bhtd->bhsd", p, v).transpose(0, 2, 1, 3).reshape(B, S, E)
    a = jnp.einsum("bse,fe->bsf", a, params["out_w"]) + params["out_b"]

    def ln(t, g, b):
        mu = t.mean(-1, keepdims=True)
        var = ((t - mu) ** 2).mean(-1, keepdims=True)
        return (t - mu) / jnp.sqrt(var + 1e-5) * g + b

    y = ln(x + a, params["ln1_g"], params["ln1_b"])
    h1 = jax.nn.relu(jnp.einsum("bse,fe->bsf", y, params["w1"]) + params["b1"])
    ffn = jnp.einsum("bsf,ef->bse", h1, params["w2"]) + params["b2"]
    z = ln(y + ffn, params["ln2_g"], params["ln2_b"])
    return jnp.transpose(z, (1, 0, 2))


def init_params(key, dim_model, dim_feedforward):
    """PyTorch-layout parameters (weights are (out, in), biases 1-D)."""
    E, Fd = dim_model, dim_feedforward
    ks = jax.random.split(key, 8)
    s = 0.05
    return {
        "in_w": jax.random.normal(ks[0], (3 * E, E), jnp.float32) * s,
        "in_b": jax.random.normal(ks[1], (3 * E,), jnp.float32) * s,
        "out_w": jax.random.normal(ks[2], (E, E), jnp.float32) * s,
        "out_b": jax.random.normal(ks[3], (E,), jnp.float32) * s,
        "w1": jax.random.normal(ks[4], (Fd, E), jnp.float32) * s,
        "b1": jax.random.normal(ks[5], (Fd,), jnp.float32) * s,
        "w2": jax.random.normal(ks[6], (E, Fd), jnp.float32) * s,
        "b2": jax.random.normal(ks[7], (E,), jnp.float32) * s,
        "ln1_g": jnp.ones((E,), jnp.float32),       # PyTorch LayerNorm default init
        "ln1_b": jnp.zeros((E,), jnp.float32),
        "ln2_g": jnp.ones((E,), jnp.float32),
        "ln2_b": jnp.zeros((E,), jnp.float32),
    }


if __name__ == "__main__":
    # Small shapes consistent with the module: seq=8, batch=2, dim_model=32,
    # nhead=4, dim_feedforward=64.  (Dropout layers are identity in eval mode.)
    # TODO(synk): train-mode stochastic dropout is intentionally not modelled.
    SEQ, BATCH, DIM, NHEAD, FF = 8, 2, 32, 4, 64

    key = jax.random.PRNGKey(0)
    key_x, key_p = jax.random.split(key)
    src = jax.random.normal(key_x, (SEQ, BATCH, DIM), jnp.float32)
    params = init_params(key_p, DIM, FF)

    ref = reference(src, params, NHEAD)

    # 1) strict f32 path (one batch element per grid step -> 2 parallel steps).
    out_f32 = transformer_encoder_layer(src, params, NHEAD,
                                        compute_dtype=jnp.float32,
                                        approx_recip=False)
    out_f32 = jax.block_until_ready(out_f32)
    assert out_f32.shape == (SEQ, BATCH, DIM)
    assert jnp.allclose(out_f32, ref, atol=1e-4, rtol=1e-4), "f32 mismatch vs reference"

    # 2) fast path: bf16 MXU inputs (f32 accumulation), approx reciprocal softmax,
    #    two batch elements per grid step.
    out_bf16 = transformer_encoder_layer(src, params, NHEAD,
                                         compute_dtype=jnp.bfloat16,
                                         approx_recip=True,
                                         block_batch=2)
    out_bf16 = jax.block_until_ready(out_bf16)
    assert out_bf16.shape == (SEQ, BATCH, DIM)
    assert jnp.allclose(out_bf16, ref, atol=2e-2, rtol=2e-2), "bf16 mismatch vs reference"

    print("KERNEL_OK")
</pallas_src>

<mosaic_0001>
module attributes {stable_mosaic.version = 11 : i64} {
  func.func @encoder_layer_kernel(%arg0: i32, %arg1: memref<1x8x32xf32, #tpu.memory_space<vmem>>, %arg2: memref<32x32xf32, #tpu.memory_space<vmem>>, %arg3: memref<32x32xf32, #tpu.memory_space<vmem>>, %arg4: memref<32x32xf32, #tpu.memory_space<vmem>>, %arg5: memref<1x32xf32, #tpu.memory_space<vmem>>, %arg6: memref<1x32xf32, #tpu.memory_space<vmem>>, %arg7: memref<1x32xf32, #tpu.memory_space<vmem>>, %arg8: memref<32x32xf32, #tpu.memory_space<vmem>>, %arg9: memref<1x32xf32, #tpu.memory_space<vmem>>, %arg10: memref<32x64xf32, #tpu.memory_space<vmem>>, %arg11: memref<1x64xf32, #tpu.memory_space<vmem>>, %arg12: memref<64x32xf32, #tpu.memory_space<vmem>>, %arg13: memref<1x32xf32, #tpu.memory_space<vmem>>, %arg14: memref<1x32xf32, #tpu.memory_space<vmem>>, %arg15: memref<1x32xf32, #tpu.memory_space<vmem>>, %arg16: memref<1x32xf32, #tpu.memory_space<vmem>>, %arg17: memref<1x32xf32, #tpu.memory_space<vmem>>, %arg18: memref<1x8x32xf32, #tpu.memory_space<vmem>>) attributes {dimension_semantics = [#tpu.dimension_semantics<parallel>], iteration_bounds = array<i64: 2>, scalar_prefetch = 0 : i64, scratch_operands = 0 : i64, tpu.core_type = #tpu.core_type<tc>, window_params = [{transform_indices = @transform_0, window_bounds = array<i64: 1, 8, 32>}, {pipeline_mode = #tpu.pipeline_mode<synchronous>, transform_indices = @transform_1, window_bounds = array<i64: 32, 32>}, {pipeline_mode = #tpu.pipeline_mode<synchronous>, transform_indices = @transform_2, window_bounds = array<i64: 32, 32>}, {pipeline_mode = #tpu.pipeline_mode<synchronous>, transform_indices = @transform_3, window_bounds = array<i64: 32, 32>}, {pipeline_mode = #tpu.pipeline_mode<synchronous>, transform_indices = @transform_4, window_bounds = array<i64: 1, 32>}, {pipeline_mode = #tpu.pipeline_mode<synchronous>, transform_indices = @transform_5, window_bounds = array<i64: 1, 32>}, {pipeline_mode = #tpu.pipeline_mode<synchronous>, transform_indices = @transform_6, window_bounds = array<i64: 1, 32>}, {pipeline_mode = #tpu.pipeline_mode<synchronous>, transform_indices = @transform_7, window_bounds = array<i64: 32, 32>}, {pipeline_mode = #tpu.pipeline_mode<synchronous>, transform_indices = @transform_8, window_bounds = array<i64: 1, 32>}, {pipeline_mode = #tpu.pipeline_mode<synchronous>, transform_indices = @transform_9, window_bounds = array<i64: 32, 64>}, {pipeline_mode = #tpu.pipeline_mode<synchronous>, transform_indices = @transform_10, window_bounds = array<i64: 1, 64>}, {pipeline_mode = #tpu.pipeline_mode<synchronous>, transform_indices = @transform_11, window_bounds = array<i64: 64, 32>}, {pipeline_mode = #tpu.pipeline_mode<synchronous>, transform_indices = @transform_12, window_bounds = array<i64: 1, 32>}, {pipeline_mode = #tpu.pipeline_mode<synchronous>, transform_indices = @transform_13, window_bounds = array<i64: 1, 32>}, {pipeline_mode = #tpu.pipeline_mode<synchronous>, transform_indices = @transform_14, window_bounds = array<i64: 1, 32>}, {pipeline_mode = #tpu.pipeline_mode<synchronous>, transform_indices = @transform_15, window_bounds = array<i64: 1, 32>}, {pipeline_mode = #tpu.pipeline_mode<synchronous>, transform_indices = @transform_16, window_bounds = array<i64: 1, 32>}, {transform_indices = @transform_17, window_bounds = array<i64: 1, 8, 32>}]} {
    %c0 = arith.constant 0 : index
    %c0_0 = arith.constant 0 : index
    %c0_1 = arith.constant 0 : index
    %0 = vector.load %arg1[%c0, %c0_0, %c0_1] : memref<1x8x32xf32, #tpu.memory_space<vmem>>, vector<1x8x32xf32>
    %1 = vector.shape_cast %0 : vector<1x8x32xf32> to vector<8x32xf32>
    %c0_2 = arith.constant 0 : index
    %c0_3 = arith.constant 0 : index
    %2 = vector.load %arg2[%c0_2, %c0_3] : memref<32x32xf32, #tpu.memory_space<vmem>>, vector<32x32xf32>
    %cst = arith.constant dense<0.000000e+00> : vector<8x32xf32>
    %3 = tpu.matmul %1, %2, %cst {dimension_numbers = #tpu.dot_dimension_numbers<[1], [0], [0], [1], [0, 0, 1, 1], [], []>} : vector<8x32xf32>, vector<32x32xf32>, vector<8x32xf32> -> vector<8x32xf32>
    %c0_4 = arith.constant 0 : index
    %c0_5 = arith.constant 0 : index
    %4 = vector.load %arg5[%c0_4, %c0_5] : memref<1x32xf32, #tpu.memory_space<vmem>>, vector<1x32xf32>
    %5 = vector.broadcast %4 : vector<1x32xf32> to vector<8x32xf32>
    %6 = arith.addf %3, %5 : vector<8x32xf32>
    %cst_6 = arith.constant 0.353553385 : f32
    %7 = vector.broadcast %cst_6 : f32 to vector<8x32xf32>
    %8 = arith.mulf %6, %7 : vector<8x32xf32>
    %c0_7 = arith.constant 0 : index
    %c0_8 = arith.constant 0 : index
    %9 = vector.load %arg3[%c0_7, %c0_8] : memref<32x32xf32, #tpu.memory_space<vmem>>, vector<32x32xf32>
    %cst_9 = arith.constant dense<0.000000e+00> : vector<8x32xf32>
    %10 = tpu.matmul %1, %9, %cst_9 {dimension_numbers = #tpu.dot_dimension_numbers<[1], [0], [0], [1], [0, 0, 1, 1], [], []>} : vector<8x32xf32>, vector<32x32xf32>, vector<8x32xf32> -> vector<8x32xf32>
    %c0_10 = arith.constant 0 : index
    %c0_11 = arith.constant 0 : index
    %11 = vector.load %arg6[%c0_10, %c0_11] : memref<1x32xf32, #tpu.memory_space<vmem>>, vector<1x32xf32>
    %12 = vector.broadcast %11 : vector<1x32xf32> to vector<8x32xf32>
    %13 = arith.addf %10, %12 : vector<8x32xf32>
    %c0_12 = arith.constant 0 : index
    %c0_13 = arith.constant 0 : index
    %14 = vector.load %arg4[%c0_12, %c0_13] : memref<32x32xf32, #tpu.memory_space<vmem>>, vector<32x32xf32>
    %cst_14 = arith.constant dense<0.000000e+00> : vector<8x32xf32>
    %15 = tpu.matmul %1, %14, %cst_14 {dimension_numbers = #tpu.dot_dimension_numbers<[1], [0], [0], [1], [0, 0, 1, 1], [], []>} : vector<8x32xf32>, vector<32x32xf32>, vector<8x32xf32> -> vector<8x32xf32>
    %c0_15 = arith.constant 0 : index
    %c0_16 = arith.constant 0 : index
    %16 = vector.load %arg7[%c0_15, %c0_16] : memref<1x32xf32, #tpu.memory_space<vmem>>, vector<1x32xf32>
    %17 = vector.broadcast %16 : vector<1x32xf32> to vector<8x32xf32>
    %18 = arith.addf %15, %17 : vector<8x32xf32>
    %c0_17 = arith.constant 0 : index
    %c0_18 = arith.constant 0 : index
    %19 = vector.load %arg8[%c0_17, %c0_18] : memref<32x32xf32, #tpu.memory_space<vmem>>, vector<32x32xf32>
    %cst_19 = arith.constant 0.000000e+00 : f32
    %20 = vector.broadcast %cst_19 : f32 to vector<8x32xf32>
    %21 = vector.extract_strided_slice %8 {offsets = [0, 0], sizes = [8, 8], strides = [1, 1]} : vector<8x32xf32> to vector<8x8xf32>
    %22 = vector.extract_strided_slice %13 {offsets = [0, 0], sizes = [8, 8], strides = [1, 1]} : vector<8x32xf32> to vector<8x8xf32>
    %23 = vector.extract_strided_slice %18 {offsets = [0, 0], sizes = [8, 8], strides = [1, 1]} : vector<8x32xf32> to vector<8x8xf32>
    %cst_20 = arith.constant dense<0.000000e+00> : vector<8x8xf32>
    %24 = tpu.matmul %21, %22, %cst_20 {dimension_numbers = #tpu.dot_dimension_numbers<[1], [1], [0], [0], [0, 0, 1, 0], [], []>} : vector<8x8xf32>, vector<8x8xf32>, vector<8x8xf32> -> vector<8x8xf32>
    %cst_21 = arith.constant dense<0xFF800000> : vector<8xf32>
    %25 = vector.multi_reduction <maximumf>, %24, %cst_21 [1] : vector<8x8xf32> to vector<8xf32>
    %26 = vector.shape_cast %25 : vector<8xf32> to vector<8x1xf32>
    %27 = vector.broadcast %26 : vector<8x1xf32> to vector<8x8xf32>
    %28 = arith.subf %24, %27 : vector<8x8xf32>
    %29 = math.exp %28 : vector<8x8xf32>
    %cst_22 = arith.constant dense<0.000000e+00> : vector<8xf32>
    %30 = vector.multi_reduction <add>, %29, %cst_22 [1] : vector<8x8xf32> to vector<8xf32>
    %31 = vector.shape_cast %30 : vector<8xf32> to vector<8x1xf32>
    %32 = tpu.reciprocal %31 : vector<8x1xf32> -> vector<8x1xf32>
    %33 = vector.broadcast %32 : vector<8x1xf32> to vector<8x8xf32>
    %34 = arith.mulf %29, %33 : vector<8x8xf32>
    %cst_23 = arith.constant dense<0.000000e+00> : vector<8x8xf32>
    %35 = tpu.matmul %34, %23, %cst_23 {dimension_numbers = #tpu.dot_dimension_numbers<[1], [0], [0], [1], [0, 0, 1, 1], [], []>} : vector<8x8xf32>, vector<8x8xf32>, vector<8x8xf32> -> vector<8x8xf32>
    %36 = vector.extract_strided_slice %19 {offsets = [0, 0], sizes = [8, 32], strides = [1, 1]} : vector<32x32xf32> to vector<8x32xf32>
    %cst_24 = arith.constant dense<0.000000e+00> : vector<8x32xf32>
    %37 = tpu.matmul %35, %36, %cst_24 {dimension_numbers = #tpu.dot_dimension_numbers<[1], [0], [0], [1], [0, 0, 1, 1], [], []>} : vector<8x8xf32>, vector<8x32xf32>, vector<8x32xf32> -> vector<8x32xf32>
    %38 = arith.addf %20, %37 : vector<8x32xf32>
    %39 = vector.extract_strided_slice %8 {offsets = [0, 8], sizes = [8, 8], strides = [1, 1]} : vector<8x32xf32> to vector<8x8xf32>
    %40 = vector.extract_strided_slice %13 {offsets = [0, 8], sizes = [8, 8], strides = [1, 1]} : vector<8x32xf32> to vector<8x8xf32>
    %41 = vector.extract_strided_slice %18 {offsets = [0, 8], sizes = [8, 8], strides = [1, 1]} : vector<8x32xf32> to vector<8x8xf32>
    %cst_25 = arith.constant dense<0.000000e+00> : vector<8x8xf32>
    %42 = tpu.matmul %39, %40, %cst_25 {dimension_numbers = #tpu.dot_dimension_numbers<[1], [1], [0], [0], [0, 0, 1, 0], [], []>} : vector<8x8xf32>, vector<8x8xf32>, vector<8x8xf32> -> vector<8x8xf32>
    %cst_26 = arith.constant dense<0xFF800000> : vector<8xf32>
    %43 = vector.multi_reduction <maximumf>, %42, %cst_26 [1] : vector<8x8xf32> to vector<8xf32>
    %44 = vector.shape_cast %43 : vector<8xf32> to vector<8x1xf32>
    %45 = vector.broadcast %44 : vector<8x1xf32> to vector<8x8xf32>
    %46 = arith.subf %42, %45 : vector<8x8xf32>
    %47 = math.exp %46 : vector<8x8xf32>
    %cst_27 = arith.constant dense<0.000000e+00> : vector<8xf32>
    %48 = vector.multi_reduction <add>, %47, %cst_27 [1] : vector<8x8xf32> to vector<8xf32>
    %49 = vector.shape_cast %48 : vector<8xf32> to vector<8x1xf32>
    %50 = tpu.reciprocal %49 : vector<8x1xf32> -> vector<8x1xf32>
    %51 = vector.broadcast %50 : vector<8x1xf32> to vector<8x8xf32>
    %52 = arith.mulf %47, %51 : vector<8x8xf32>
    %cst_28 = arith.constant dense<0.000000e+00> : vector<8x8xf32>
    %53 = tpu.matmul %52, %41, %cst_28 {dimension_numbers = #tpu.dot_dimension_numbers<[1], [0], [0], [1], [0, 0, 1, 1], [], []>} : vector<8x8xf32>, vector<8x8xf32>, vector<8x8xf32> -> vector<8x8xf32>
    %54 = vector.extract_strided_slice %19 {offsets = [8, 0], sizes = [8, 32], strides = [1, 1]} : vector<32x32xf32> to vector<8x32xf32>
    %cst_29 = arith.constant dense<0.000000e+00> : vector<8x32xf32>
    %55 = tpu.matmul %53, %54, %cst_29 {dimension_numbers = #tpu.dot_dimension_numbers<[1], [0], [0], [1], [0, 0, 1, 1], [], []>} : vector<8x8xf32>, vector<8x32xf32>, vector<8x32xf32> -> vector<8x32xf32>
    %56 = arith.addf %38, %55 : vector<8x32xf32>
    %57 = vector.extract_strided_slice %8 {offsets = [0, 16], sizes = [8, 8], strides = [1, 1]} : vector<8x32xf32> to vector<8x8xf32>
    %58 = vector.extract_strided_slice %13 {offsets = [0, 16], sizes = [8, 8], strides = [1, 1]} : vector<8x32xf32> to vector<8x8xf32>
    %59 = vector.extract_strided_slice %18 {offsets = [0, 16], sizes = [8, 8], strides = [1, 1]} : vector<8x32xf32> to vector<8x8xf32>
    %cst_30 = arith.constant dense<0.000000e+00> : vector<8x8xf32>
    %60 = tpu.matmul %57, %58, %cst_30 {dimension_numbers = #tpu.dot_dimension_numbers<[1], [1], [0], [0], [0, 0, 1, 0], [], []>} : vector<8x8xf32>, vector<8x8xf32>, vector<8x8xf32> -> vector<8x8xf32>
    %cst_31 = arith.constant dense<0xFF800000> : vector<8xf32>
    %61 = vector.multi_reduction <maximumf>, %60, %cst_31 [1] : vector<8x8xf32> to vector<8xf32>
    %62 = vector.shape_cast %61 : vector<8xf32> to vector<8x1xf32>
    %63 = vector.broadcast %62 : vector<8x1xf32> to vector<8x8xf32>
    %64 = arith.subf %60, %63 : vector<8x8xf32>
    %65 = math.exp %64 : vector<8x8xf32>
    %cst_32 = arith.constant dense<0.000000e+00> : vector<8xf32>
    %66 = vector.multi_reduction <add>, %65, %cst_32 [1] : vector<8x8xf32> to vector<8xf32>
    %67 = vector.shape_cast %66 : vector<8xf32> to vector<8x1xf32>
    %68 = tpu.reciprocal %67 : vector<8x1xf32> -> vector<8x1xf32>
    %69 = vector.broadcast %68 : vector<8x1xf32> to vector<8x8xf32>
    %70 = arith.mulf %65, %69 : vector<8x8xf32>
    %cst_33 = arith.constant dense<0.000000e+00> : vector<8x8xf32>
    %71 = tpu.matmul %70, %59, %cst_33 {dimension_numbers = #tpu.dot_dimension_numbers<[1], [0], [0], [1], [0, 0, 1, 1], [], []>} : vector<8x8xf32>, vector<8x8xf32>, vector<8x8xf32> -> vector<8x8xf32>
    %72 = vector.extract_strided_slice %19 {offsets = [16, 0], sizes = [8, 32], strides = [1, 1]} : vector<32x32xf32> to vector<8x32xf32>
    %cst_34 = arith.constant dense<0.000000e+00> : vector<8x32xf32>
    %73 = tpu.matmul %71, %72, %cst_34 {dimension_numbers = #tpu.dot_dimension_numbers<[1], [0], [0], [1], [0, 0, 1, 1], [], []>} : vector<8x8xf32>, vector<8x32xf32>, vector<8x32xf32> -> vector<8x32xf32>
    %74 = arith.addf %56, %73 : vector<8x32xf32>
    %75 = vector.extract_strided_slice %8 {offsets = [0, 24], sizes = [8, 8], strides = [1, 1]} : vector<8x32xf32> to vector<8x8xf32>
    %76 = vector.extract_strided_slice %13 {offsets = [0, 24], sizes = [8, 8], strides = [1, 1]} : vector<8x32xf32> to vector<8x8xf32>
    %77 = vector.extract_strided_slice %18 {offsets = [0, 24], sizes = [8, 8], strides = [1, 1]} : vector<8x32xf32> to vector<8x8xf32>
    %cst_35 = arith.constant dense<0.000000e+00> : vector<8x8xf32>
    %78 = tpu.matmul %75, %76, %cst_35 {dimension_numbers = #tpu.dot_dimension_numbers<[1], [1], [0], [0], [0, 0, 1, 0], [], []>} : vector<8x8xf32>, vector<8x8xf32>, vector<8x8xf32> -> vector<8x8xf32>
    %cst_36 = arith.constant dense<0xFF800000> : vector<8xf32>
    %79 = vector.multi_reduction <maximumf>, %78, %cst_36 [1] : vector<8x8xf32> to vector<8xf32>
    %80 = vector.shape_cast %79 : vector<8xf32> to vector<8x1xf32>
    %81 = vector.broadcast %80 : vector<8x1xf32> to vector<8x8xf32>
    %82 = arith.subf %78, %81 : vector<8x8xf32>
    %83 = math.exp %82 : vector<8x8xf32>
    %cst_37 = arith.constant dense<0.000000e+00> : vector<8xf32>
    %84 = vector.multi_reduction <add>, %83, %cst_37 [1] : vector<8x8xf32> to vector<8xf32>
    %85 = vector.shape_cast %84 : vector<8xf32> to vector<8x1xf32>
    %86 = tpu.reciprocal %85 : vector<8x1xf32> -> vector<8x1xf32>
    %87 = vector.broadcast %86 : vector<8x1xf32> to vector<8x8xf32>
    %88 = arith.mulf %83, %87 : vector<8x8xf32>
    %cst_38 = arith.constant dense<0.000000e+00> : vector<8x8xf32>
    %89 = tpu.matmul %88, %77, %cst_38 {dimension_numbers = #tpu.dot_dimension_numbers<[1], [0], [0], [1], [0, 0, 1, 1], [], []>} : vector<8x8xf32>, vector<8x8xf32>, vector<8x8xf32> -> vector<8x8xf32>
    %90 = vector.extract_strided_slice %19 {offsets = [24, 0], sizes = [8, 32], strides = [1, 1]} : vector<32x32xf32> to vector<8x32xf32>
    %cst_39 = arith.constant dense<0.000000e+00> : vector<8x32xf32>
    %91 = tpu.matmul %89, %90, %cst_39 {dimension_numbers = #tpu.dot_dimension_numbers<[1], [0], [0], [1], [0, 0, 1, 1], [], []>} : vector<8x8xf32>, vector<8x32xf32>, vector<8x32xf32> -> vector<8x32xf32>
    %92 = arith.addf %74, %91 : vector<8x32xf32>
    %c0_40 = arith.constant 0 : index
    %c0_41 = arith.constant 0 : index
    %93 = vector.load %arg9[%c0_40, %c0_41] : memref<1x32xf32, #tpu.memory_space<vmem>>, vector<1x32xf32>
    %94 = vector.broadcast %93 : vector<1x32xf32> to vector<8x32xf32>
    %95 = arith.addf %92, %94 : vector<8x32xf32>
    %96 = arith.addf %1, %95 : vector<8x32xf32>
    %cst_42 = arith.constant dense<0.000000e+00> : vector<8xf32>
    %97 = vector.multi_reduction <add>, %96, %cst_42 [1] : vector<8x32xf32> to vector<8xf32>
    %98 = vector.shape_cast %97 : vector<8xf32> to vector<8x1xf32>
    %cst_43 = arith.constant 3.200000e+01 : f32
    %99 = vector.broadcast %cst_43 : f32 to vector<8x1xf32>
    %100 = arith.divf %98, %99 : vector<8x1xf32>
    %101 = vector.broadcast %100 : vector<8x1xf32> to vector<8x32xf32>
    %102 = arith.subf %96, %101 : vector<8x32xf32>
    %103 = arith.mulf %102, %102 : vector<8x32xf32>
    %cst_44 = arith.constant dense<0.000000e+00> : vector<8xf32>
    %104 = vector.multi_reduction <add>, %103, %cst_44 [1] : vector<8x32xf32> to vector<8xf32>
    %105 = vector.shape_cast %104 : vector<8xf32> to vector<8x1xf32>
    %cst_45 = arith.constant 3.200000e+01 : f32
    %106 = vector.broadcast %cst_45 : f32 to vector<8x1xf32>
    %107 = arith.divf %105, %106 : vector<8x1xf32>
    %cst_46 = arith.constant 9.99999974E-6 : f32
    %108 = vector.broadcast %cst_46 : f32 to vector<8x1xf32>
    %109 = arith.addf %107, %108 : vector<8x1xf32>
    %110 = math.rsqrt %109 : vector<8x1xf32>
    %111 = vector.broadcast %110 : vector<8x1xf32> to vector<8x32xf32>
    %112 = arith.mulf %102, %111 : vector<8x32xf32>
    %c0_47 = arith.constant 0 : index
    %c0_48 = arith.constant 0 : index
    %113 = vector.load %arg14[%c0_47, %c0_48] : memref<1x32xf32, #tpu.memory_space<vmem>>, vector<1x32xf32>
    %114 = vector.broadcast %113 : vector<1x32xf32> to vector<8x32xf32>
    %115 = arith.mulf %112, %114 : vector<8x32xf32>
    %c0_49 = arith.constant 0 : index
    %c0_50 = arith.constant 0 : index
    %116 = vector.load %arg15[%c0_49, %c0_50] : memref<1x32xf32, #tpu.memory_space<vmem>>, vector<1x32xf32>
    %117 = vector.broadcast %116 : vector<1x32xf32> to vector<8x32xf32>
    %118 = arith.addf %115, %117 : vector<8x32xf32>
    %c0_51 = arith.constant 0 : index
    %c0_52 = arith.constant 0 : index
    %119 = vector.load %arg10[%c0_51, %c0_52] : memref<32x64xf32, #tpu.memory_space<vmem>>, vector<32x64xf32>
    %cst_53 = arith.constant dense<0.000000e+00> : vector<8x64xf32>
    %120 = tpu.matmul %118, %119, %cst_53 {dimension_numbers = #tpu.dot_dimension_numbers<[1], [0], [0], [1], [0, 0, 1, 1], [], []>} : vector<8x32xf32>, vector<32x64xf32>, vector<8x64xf32> -> vector<8x64xf32>
    %c0_54 = arith.constant 0 : index
    %c0_55 = arith.constant 0 : index
    %121 = vector.load %arg11[%c0_54, %c0_55] : memref<1x64xf32, #tpu.memory_space<vmem>>, vector<1x64xf32>
    %122 = vector.broadcast %121 : vector<1x64xf32> to vector<8x64xf32>
    %123 = arith.addf %120, %122 : vector<8x64xf32>
    %cst_56 = arith.constant 0.000000e+00 : f32
    %124 = vector.broadcast %cst_56 : f32 to vector<8x64xf32>
    %125 = arith.maximumf %123, %124 : vector<8x64xf32>
    %c0_57 = arith.constant 0 : index
    %c0_58 = arith.constant 0 : index
    %126 = vector.load %arg12[%c0_57, %c0_58] : memref<64x32xf32, #tpu.memory_space<vmem>>, vector<64x32xf32>
    %cst_59 = arith.constant dense<0.000000e+00> : vector<8x32xf32>
    %127 = tpu.matmul %125, %126, %cst_59 {dimension_numbers = #tpu.dot_dimension_numbers<[1], [0], [0], [1], [0, 0, 1, 1], [], []>} : vector<8x64xf32>, vector<64x32xf32>, vector<8x32xf32> -> vector<8x32xf32>
    %c0_60 = arith.constant 0 : index
    %c0_61 = arith.constant 0 : index
    %128 = vector.load %arg13[%c0_60, %c0_61] : memref<1x32xf32, #tpu.memory_space<vmem>>, vector<1x32xf32>
    %129 = vector.broadcast %128 : vector<1x32xf32> to vector<8x32xf32>
    %130 = arith.addf %127, %129 : vector<8x32xf32>
    %131 = arith.addf %118, %130 : vector<8x32xf32>
    %cst_62 = arith.constant dense<0.000000e+00> : vector<8xf32>
    %132 = vector.multi_reduction <add>, %131, %cst_62 [1] : vector<8x32xf32> to vector<8xf32>
    %133 = vector.shape_cast %132 : vector<8xf32> to vector<8x1xf32>
    %cst_63 = arith.constant 3.200000e+01 : f32
    %134 = vector.broadcast %cst_63 : f32 to vector<8x1xf32>
    %135 = arith.divf %133, %134 : vector<8x1xf32>
    %136 = vector.broadcast %135 : vector<8x1xf32> to vector<8x32xf32>
    %137 = arith.subf %131, %136 : vector<8x32xf32>
    %138 = arith.mulf %137, %137 : vector<8x32xf32>
    %cst_64 = arith.constant dense<0.000000e+00> : vector<8xf32>
    %139 = vector.multi_reduction <add>, %138, %cst_64 [1] : vector<8x32xf32> to vector<8xf32>
    %140 = vector.shape_cast %139 : vector<8xf32> to vector<8x1xf32>
    %cst_65 = arith.constant 3.200000e+01 : f32
    %141 = vector.broadcast %cst_65 : f32 to vector<8x1xf32>
    %142 = arith.divf %140, %141 : vector<8x1xf32>
    %cst_66 = arith.constant 9.99999974E-6 : f32
    %143 = vector.broadcast %cst_66 : f32 to vector<8x1xf32>
    %144 = arith.addf %142, %143 : vector<8x1xf32>
    %145 = math.rsqrt %144 : vector<8x1xf32>
    %146 = vector.broadcast %145 : vector<8x1xf32> to vector<8x32xf32>
    %147 = arith.mulf %137, %146 : vector<8x32xf32>
    %c0_67 = arith.constant 0 : index
    %c0_68 = arith.constant 0 : index
    %148 = vector.load %arg16[%c0_67, %c0_68] : memref<1x32xf32, #tpu.memory_space<vmem>>, vector<1x32xf32>
    %149 = vector.broadcast %148 : vector<1x32xf32> to vector<8x32xf32>
    %150 = arith.mulf %147, %149 : vector<8x32xf32>
    %c0_69 = arith.constant 0 : index
    %c0_70 = arith.constant 0 : index
    %151 = vector.load %arg17[%c0_69, %c0_70] : memref<1x32xf32, #tpu.memory_space<vmem>>, vector<1x32xf32>
    %152 = vector.broadcast %151 : vector<1x32xf32> to vector<8x32xf32>
    %153 = arith.addf %150, %152 : vector<8x32xf32>
    %154 = vector.shape_cast %153 : vector<8x32xf32> to vector<1x8x32xf32>
    %c0_71 = arith.constant 0 : index
    %c0_72 = arith.constant 0 : index
    %c0_73 = arith.constant 0 : index
    %155 = vector.load %arg18[%c0_71, %c0_72, %c0_73] : memref<1x8x32xf32, #tpu.memory_space<vmem>>, vector<1x8x32xf32>
    tpu.vector_store %arg18[%c0_71, %c0_72, %c0_73], %154 {strides = array<i32>} : memref<1x8x32xf32, #tpu.memory_space<vmem>>, vector<1x8x32xf32>,
    return
  }
  func.func @transform_0(%arg0: i32) -> (i32, i32, i32) {
    %c0_i32 = arith.constant 0 : i32
    %c0_i32_0 = arith.constant 0 : i32
    %c0_i32_1 = arith.constant 0 : i32
    return %arg0, %c0_i32, %c0_i32_0 : i32, i32, i32
  }
  func.func @transform_1(%arg0: i32) -> (i32, i32) {
    %c0_i32 = arith.constant 0 : i32
    %c0_i32_0 = arith.constant 0 : i32
    %c0_i32_1 = arith.constant 0 : i32
    return %c0_i32, %c0_i32_0 : i32, i32
  }
  func.func @transform_2(%arg0: i32) -> (i32, i32) {
    %c0_i32 = arith.constant 0 : i32
    %c0_i32_0 = arith.constant 0 : i32
    %c0_i32_1 = arith.constant 0 : i32
    return %c0_i32, %c0_i32_0 : i32, i32
  }
  func.func @transform_3(%arg0: i32) -> (i32, i32) {
    %c0_i32 = arith.constant 0 : i32
    %c0_i32_0 = arith.constant 0 : i32
    %c0_i32_1 = arith.constant 0 : i32
    return %c0_i32, %c0_i32_0 : i32, i32
  }
  func.func @transform_4(%arg0: i32) -> (i32, i32) {
    %c0_i32 = arith.constant 0 : i32
    %c0_i32_0 = arith.constant 0 : i32
    %c0_i32_1 = arith.constant 0 : i32
    return %c0_i32, %c0_i32_0 : i32, i32
  }
  func.func @transform_5(%arg0: i32) -> (i32, i32) {
    %c0_i32 = arith.constant 0 : i32
    %c0_i32_0 = arith.constant 0 : i32
    %c0_i32_1 = arith.constant 0 : i32
    return %c0_i32, %c0_i32_0 : i32, i32
  }
  func.func @transform_6(%arg0: i32) -> (i32, i32) {
    %c0_i32 = arith.constant 0 : i32
    %c0_i32_0 = arith.constant 0 : i32
    %c0_i32_1 = arith.constant 0 : i32
    return %c0_i32, %c0_i32_0 : i32, i32
  }
  func.func @transform_7(%arg0: i32) -> (i32, i32) {
    %c0_i32 = arith.constant 0 : i32
    %c0_i32_0 = arith.constant 0 : i32
    %c0_i32_1 = arith.constant 0 : i32
    return %c0_i32, %c0_i32_0 : i32, i32
  }
  func.func @transform_8(%arg0: i32) -> (i32, i32) {
    %c0_i32 = arith.constant 0 : i32
    %c0_i32_0 = arith.constant 0 : i32
    %c0_i32_1 = arith.constant 0 : i32
    return %c0_i32, %c0_i32_0 : i32, i32
  }
  func.func @transform_9(%arg0: i32) -> (i32, i32) {
    %c0_i32 = arith.constant 0 : i32
    %c0_i32_0 = arith.constant 0 : i32
    %c0_i32_1 = arith.constant 0 : i32
    return %c0_i32, %c0_i32_0 : i32, i32
  }
  func.func @transform_10(%arg0: i32) -> (i32, i32) {
    %c0_i32 = arith.constant 0 : i32
    %c0_i32_0 = arith.constant 0 : i32
    %c0_i32_1 = arith.constant 0 : i32
    return %c0_i32, %c0_i32_0 : i32, i32
  }
  func.func @transform_11(%arg0: i32) -> (i32, i32) {
    %c0_i32 = arith.constant 0 : i32
    %c0_i32_0 = arith.constant 0 : i32
    %c0_i32_1 = arith.constant 0 : i32
    return %c0_i32, %c0_i32_0 : i32, i32
  }
  func.func @transform_12(%arg0: i32) -> (i32, i32) {
    %c0_i32 = arith.constant 0 : i32
    %c0_i32_0 = arith.constant 0 : i32
    %c0_i32_1 = arith.constant 0 : i32
    return %c0_i32, %c0_i32_0 : i32, i32
  }
  func.func @transform_13(%arg0: i32) -> (i32, i32) {
    %c0_i32 = arith.constant 0 : i32
    %c0_i32_0 = arith.constant 0 : i32
    %c0_i32_1 = arith.constant 0 : i32
    return %c0_i32, %c0_i32_0 : i32, i32
  }
  func.func @transform_14(%arg0: i32) -> (i32, i32) {
    %c0_i32 = arith.constant 0 : i32
    %c0_i32_0 = arith.constant 0 : i32
    %c0_i32_1 = arith.constant 0 : i32
    return %c0_i32, %c0_i32_0 : i32, i32
  }
  func.func @transform_15(%arg0: i32) -> (i32, i32) {
    %c0_i32 = arith.constant 0 : i32
    %c0_i32_0 = arith.constant 0 : i32
    %c0_i32_1 = arith.constant 0 : i32
    return %c0_i32, %c0_i32_0 : i32, i32
  }
  func.func @transform_16(%arg0: i32) -> (i32, i32) {
    %c0_i32 = arith.constant 0 : i32
    %c0_i32_0 = arith.constant 0 : i32
    %c0_i32_1 = arith.constant 0 : i32
    return %c0_i32, %c0_i32_0 : i32, i32
  }
  func.func @transform_17(%arg0: i32) -> (i32, i32, i32) {
    %c0_i32 = arith.constant 0 : i32
    %c0_i32_0 = arith.constant 0 : i32
    %c0_i32_1 = arith.constant 0 : i32
    return %arg0, %c0_i32, %c0_i32_0 : i32, i32, i32
  }
}

</mosaic_0001>

<llo_original>
// kernel: transformer_encoder_layer.1
$region0: #{transformer_encoder_layer.1}
  #allocation0 [shape = 'u32[]', space=smem, size = 0x4, offset = 0x4, fixed_abs, tag = 'smem constant byte address 0x4 - core index']
  #allocation1 [shape = 'u32[144,128]{1,0:T(1,128)}', space=vmem, size = 0x12000, scoped, tag = 'internal scratch']
  %s0 = inlined_call_operand.vmem [shape: f32[2,8,32], index: 0, kind: input, shape index: {}]
  %s1 = inlined_call_operand.vmem [shape: f32[32,32], index: 1, kind: input, shape index: {}]
  %s2 = inlined_call_operand.vmem [shape: f32[32,32], index: 2, kind: input, shape index: {}]
  %s3 = inlined_call_operand.vmem [shape: f32[32,32], index: 3, kind: input, shape index: {}]
  %s4 = inlined_call_operand.vmem [shape: f32[1,32], index: 4, kind: input, shape index: {}]
  %s5 = inlined_call_operand.vmem [shape: f32[1,32], index: 5, kind: input, shape index: {}]
  %s6 = inlined_call_operand.vmem [shape: f32[1,32], index: 6, kind: input, shape index: {}]
  %s7 = inlined_call_operand.vmem [shape: f32[32,32], index: 7, kind: input, shape index: {}]
  %s8 = inlined_call_operand.vmem [shape: f32[1,32], index: 8, kind: input, shape index: {}]
  %s9 = inlined_call_operand.vmem [shape: f32[32,64], index: 9, kind: input, shape index: {}]
  %s10 = inlined_call_operand.vmem [shape: f32[1,64], index: 10, kind: input, shape index: {}]
  %s11 = inlined_call_operand.vmem [shape: f32[64,32], index: 11, kind: input, shape index: {}]
  %s12 = inlined_call_operand.vmem [shape: f32[1,32], index: 12, kind: input, shape index: {}]
  %s13 = inlined_call_operand.vmem [shape: f32[1,32], index: 13, kind: input, shape index: {}]
  %s14 = inlined_call_operand.vmem [shape: f32[1,32], index: 14, kind: input, shape index: {}]
  %s15 = inlined_call_operand.vmem [shape: f32[1,32], index: 15, kind: input, shape index: {}]
  %s16 = inlined_call_operand.vmem [shape: f32[1,32], index: 16, kind: input, shape index: {}]
  %s17 = inlined_call_operand.vmem [shape: f32[2,8,32], index: 17, kind: output, shape index: {}]
  %s18 = sld [smem:[#allocation0]]
  $region101: #{transformer_encoder_layer.1} parent=0
    _
  %s20 = ssub.s32 1, %s18
  %s21 = scalar_select 0, %s20, %s18
  loop: start=0, step=1, limit=4
  $region2: #{transformer_encoder_layer.1} parent=0 // loop_pre_header
    _
  $region3: #{transformer_encoder_layer.1} parent=0 // loop_header
    %s23 = sphi 0, %s27
    %p24 = scmp.ge.s32.totalorder %s23, 4
    %s33 = sphi 0, %s35
    %s36 = sphi 0, %s33
    %s37 = sphi 0, %s36
    %s53 = sphi 0, %s37
    %s57 = sphi 0, %s57
    %s59 = sphi 0, %s57
    %s60 = sphi 0, %s59
    %s74 = sphi 0, %s60
    %s78 = sphi 0, %s78
    %s80 = sphi 0, %s78
    %s81 = sphi 0, %s80
    %s95 = sphi 0, %s81
    %s99 = sphi 0, %s99
    %s101 = sphi 0, %s99
    %s102 = sphi 0, %s101
    %s116 = sphi 0, %s102
    %s120 = sphi 0, %s120
    %s122 = sphi 0, %s120
    %s123 = sphi 0, %s122
    %s137 = sphi 0, %s123
    %s141 = sphi 0, %s141
    %s143 = sphi 0, %s141
    %s144 = sphi 0, %s143
    %s158 = sphi 0, %s144
    %s162 = sphi 0, %s162
    %s164 = sphi 0, %s162
    %s165 = sphi 0, %s164
    %s179 = sphi 0, %s165
    %s183 = sphi 0, %s183
    %s185 = sphi 0, %s183
    %s186 = sphi 0, %s185
    %s200 = sphi 0, %s186
    %s204 = sphi 0, %s204
    %s206 = sphi 0, %s204
    %s207 = sphi 0, %s206
    %s221 = sphi 0, %s207
    %s225 = sphi 0, %s225
    %s227 = sphi 0, %s225
    %s228 = sphi 0, %s227
    %s242 = sphi 0, %s228
    %s246 = sphi 0, %s246
    %s248 = sphi 0, %s246
    %s249 = sphi 0, %s248
    %s263 = sphi 0, %s249
    %s267 = sphi 0, %s267
    %s269 = sphi 0, %s267
    %s270 = sphi 0, %s269
    %s284 = sphi 0, %s270
    %s288 = sphi 0, %s288
    %s290 = sphi 0, %s288
    %s291 = sphi 0, %s290
    %s305 = sphi 0, %s291
    %s309 = sphi 0, %s309
    %s311 = sphi 0, %s309
    %s312 = sphi 0, %s311
    %s326 = sphi 0, %s312
    %s330 = sphi 0, %s330
    %s332 = sphi 0, %s330
    %s333 = sphi 0, %s332
    %s347 = sphi 0, %s333
    %s351 = sphi 0, %s351
    %s353 = sphi 0, %s351
    %s354 = sphi 0, %s353
    %s368 = sphi 0, %s354
    %s372 = sphi 0, %s372
    %s374 = sphi 0, %s372
    %s375 = sphi 0, %s374
    %s389 = sphi 0, %s375
    %s395 = sphi 0, %s397
    %s398 = sphi 0, %s395
    %s399 = sphi 0, %s398
    %s415 = sphi 0, %s399
  $region4: #{transformer_encoder_layer.1} parent=0 // loop_header_branch
    %26 = sbr.rel (%p24) target = $region8
  $region5: #{transformer_encoder_layer.1} parent=0 // loop_body
    %s28 = ssub.s32 %s23, 1
    %s29 = ssub.s32 %s23, 2
    %s30 = sadd.s32 %s23, 1
    %s31 = ssub.s32 %s23, %s30
    %p32 = scmp.eq.s32.totalorder %s31, 0
    %s34 = sadd.s32 %s33, 1
    %s35 = scalar_select %p32, %s33, %s34
    %p38 = pneg %p32
    %p39 = scmp.eq.s32.totalorder %s23, 1
    %p40 = por %p38, %p39
    %p41 = scmp.ne.s32.totalorder %s33, %s36
    %p42 = scmp.eq.s32.totalorder %s23, 0
    %p43 = por %p41, %p42
    %p44 = scmp.ne.s32.totalorder %s33, %s36
    %p45 = scmp.eq.s32.totalorder %s28, 1
    %p46 = por %p44, %p45
    %p47 = scmp.ne.s32.totalorder %s36, %s37
    %p48 = scmp.eq.s32.totalorder %s28, 0
    %p49 = por %p47, %p48
    %p50 = scmp.ne.s32.totalorder %s36, %s37
    %p51 = scmp.eq.s32.totalorder %s29, 1
    %p52 = por %p50, %p51
    %p54 = scmp.ne.s32.totalorder %s37, %s53
    %p55 = scmp.eq.s32.totalorder %s29, 0
    %p56 = por %p54, %p55
    %s58 = sadd.s32 %s57, 1
    %p61 = scmp.eq.s32.totalorder %s23, 1
    %p62 = scmp.ne.s32.totalorder %s57, %s59
    %p63 = scmp.eq.s32.totalorder %s23, 0
    %p64 = por %p62, %p63
    %p65 = scmp.ne.s32.totalorder %s57, %s59
    %p66 = scmp.eq.s32.totalorder %s28, 1
    %p67 = por %p65, %p66
    %p68 = scmp.ne.s32.totalorder %s59, %s60
    %p69 = scmp.eq.s32.totalorder %s28, 0
    %p70 = por %p68, %p69
    %p71 = scmp.ne.s32.totalorder %s59, %s60
    %p72 = scmp.eq.s32.totalorder %s29, 1
    %p73 = por %p71, %p72
    %p75 = scmp.ne.s32.totalorder %s60, %s74
    %p76 = scmp.eq.s32.totalorder %s29, 0
    %p77 = por %p75, %p76
    %s79 = sadd.s32 %s78, 1
    %p82 = scmp.eq.s32.totalorder %s23, 1
    %p83 = scmp.ne.s32.totalorder %s78, %s80
    %p84 = scmp.eq.s32.totalorder %s23, 0
    %p85 = por %p83, %p84
    %p86 = scmp.ne.s32.totalorder %s78, %s80
    %p87 = scmp.eq.s32.totalorder %s28, 1
    %p88 = por %p86, %p87
    %p89 = scmp.ne.s32.totalorder %s80, %s81
    %p90 = scmp.eq.s32.totalorder %s28, 0
    %p91 = por %p89, %p90
    %p92 = scmp.ne.s32.totalorder %s80, %s81
    %p93 = scmp.eq.s32.totalorder %s29, 1
    %p94 = por %p92, %p93
    %p96 = scmp.ne.s32.totalorder %s81, %s95
    %p97 = scmp.eq.s32.totalorder %s29, 0
    %p98 = por %p96, %p97
    %s100 = sadd.s32 %s99, 1
    %p103 = scmp.eq.s32.totalorder %s23, 1
    %p104 = scmp.ne.s32.totalorder %s99, %s101
    %p105 = scmp.eq.s32.totalorder %s23, 0
    %p106 = por %p104, %p105
    %p107 = scmp.ne.s32.totalorder %s99, %s101
    %p108 = scmp.eq.s32.totalorder %s28, 1
    %p109 = por %p107, %p108
    %p110 = scmp.ne.s32.totalorder %s101, %s102
    %p111 = scmp.eq.s32.totalorder %s28, 0
    %p112 = por %p110, %p111
    %p113 = scmp.ne.s32.totalorder %s101, %s102
    %p114 = scmp.eq.s32.totalorder %s29, 1
    %p115 = por %p113, %p114
    %p117 = scmp.ne.s32.totalorder %s102, %s116
    %p118 = scmp.eq.s32.totalorder %s29, 0
    %p119 = por %p117, %p118
    %s121 = sadd.s32 %s120, 1
    %p124 = scmp.eq.s32.totalorder %s23, 1
    %p125 = scmp.ne.s32.totalorder %s120, %s122
    %p126 = scmp.eq.s32.totalorder %s23, 0
    %p127 = por %p125, %p126
    %p128 = scmp.ne.s32.totalorder %s120, %s122
    %p129 = scmp.eq.s32.totalorder %s28, 1
    %p130 = por %p128, %p129
    %p131 = scmp.ne.s32.totalorder %s122, %s123
    %p132 = scmp.eq.s32.totalorder %s28, 0
    %p133 = por %p131, %p132
    %p134 = scmp.ne.s32.totalorder %s122, %s123
    %p135 = scmp.eq.s32.totalorder %s29, 1
    %p136 = por %p134, %p135
    %p138 = scmp.ne.s32.totalorder %s123, %s137
    %p139 = scmp.eq.s32.totalorder %s29, 0
    %p140 = por %p138, %p139
    %s142 = sadd.s32 %s141, 1
    %p145 = scmp.eq.s32.totalorder %s23, 1
    %p146 = scmp.ne.s32.totalorder %s141, %s143
    %p147 = scmp.eq.s32.totalorder %s23, 0
    %p148 = por %p146, %p147
    %p149 = scmp.ne.s32.totalorder %s141, %s143
    %p150 = scmp.eq.s32.totalorder %s28, 1
    %p151 = por %p149, %p150
    %p152 = scmp.ne.s32.totalorder %s143, %s144
    %p153 = scmp.eq.s32.totalorder %s28, 0
    %p154 = por %p152, %p153
    %p155 = scmp.ne.s32.totalorder %s143, %s144
    %p156 = scmp.eq.s32.totalorder %s29, 1
    %p157 = por %p155, %p156
    %p159 = scmp.ne.s32.totalorder %s144, %s158
    %p160 = scmp.eq.s32.totalorder %s29, 0
    %p161 = por %p159, %p160
    %s163 = sadd.s32 %s162, 1
    %p166 = scmp.eq.s32.totalorder %s23, 1
    %p167 = scmp.ne.s32.totalorder %s162, %s164
    %p168 = scmp.eq.s32.totalorder %s23, 0
    %p169 = por %p167, %p168
    %p170 = scmp.ne.s32.totalorder %s162, %s164
    %p171 = scmp.eq.s32.totalorder %s28, 1
    %p172 = por %p170, %p171
    %p173 = scmp.ne.s32.totalorder %s164, %s165
    %p174 = scmp.eq.s32.totalorder %s28, 0
    %p175 = por %p173, %p174
    %p176 = scmp.ne.s32.totalorder %s164, %s165
    %p177 = scmp.eq.s32.totalorder %s29, 1
    %p178 = por %p176, %p177
    %p180 = scmp.ne.s32.totalorder %s165, %s179
    %p181 = scmp.eq.s32.totalorder %s29, 0
    %p182 = por %p180, %p181
    %s184 = sadd.s32 %s183, 1
    %p187 = scmp.eq.s32.totalorder %s23, 1
    %p188 = scmp.ne.s32.totalorder %s183, %s185
    %p189 = scmp.eq.s32.totalorder %s23, 0
    %p190 = por %p188, %p189
    %p191 = scmp.ne.s32.totalorder %s183, %s185
    %p192 = scmp.eq.s32.totalorder %s28, 1
    %p193 = por %p191, %p192
    %p194 = scmp.ne.s32.totalorder %s185, %s186
    %p195 = scmp.eq.s32.totalorder %s28, 0
    %p196 = por %p194, %p195
    %p197 = scmp.ne.s32.totalorder %s185, %s186
    %p198 = scmp.eq.s32.totalorder %s29, 1
    %p199 = por %p197, %p198
    %p201 = scmp.ne.s32.totalorder %s186, %s200
    %p202 = scmp.eq.s32.totalorder %s29, 0
    %p203 = por %p201, %p202
    %s205 = sadd.s32 %s204, 1
    %p208 = scmp.eq.s32.totalorder %s23, 1
    %p209 = scmp.ne.s32.totalorder %s204, %s206
    %p210 = scmp.eq.s32.totalorder %s23, 0
    %p211 = por %p209, %p210
    %p212 = scmp.ne.s32.totalorder %s204, %s206
    %p213 = scmp.eq.s32.totalorder %s28, 1
    %p214 = por %p212, %p213
    %p215 = scmp.ne.s32.totalorder %s206, %s207
    %p216 = scmp.eq.s32.totalorder %s28, 0
    %p217 = por %p215, %p216
    %p218 = scmp.ne.s32.totalorder %s206, %s207
    %p219 = scmp.eq.s32.totalorder %s29, 1
    %p220 = por %p218, %p219
    %p222 = scmp.ne.s32.totalorder %s207, %s221
    %p223 = scmp.eq.s32.totalorder %s29, 0
    %p224 = por %p222, %p223
    %s226 = sadd.s32 %s225, 1
    %p229 = scmp.eq.s32.totalorder %s23, 1
    %p230 = scmp.ne.s32.totalorder %s225, %s227
    %p231 = scmp.eq.s32.totalorder %s23, 0
    %p232 = por %p230, %p231
    %p233 = scmp.ne.s32.totalorder %s225, %s227
    %p234 = scmp.eq.s32.totalorder %s28, 1
    %p235 = por %p233, %p234
    %p236 = scmp.ne.s32.totalorder %s227, %s228
    %p237 = scmp.eq.s32.totalorder %s28, 0
    %p238 = por %p236, %p237
    %p239 = scmp.ne.s32.totalorder %s227, %s228
    %p240 = scmp.eq.s32.totalorder %s29, 1
    %p241 = por %p239, %p240
    %p243 = scmp.ne.s32.totalorder %s228, %s242
    %p244 = scmp.eq.s32.totalorder %s29, 0
    %p245 = por %p243, %p244
    %s247 = sadd.s32 %s246, 1
    %p250 = scmp.eq.s32.totalorder %s23, 1
    %p251 = scmp.ne.s32.totalorder %s246, %s248
    %p252 = scmp.eq.s32.totalorder %s23, 0
    %p253 = por %p251, %p252
    %p254 = scmp.ne.s32.totalorder %s246, %s248
    %p255 = scmp.eq.s32.totalorder %s28, 1
    %p256 = por %p254, %p255
    %p257 = scmp.ne.s32.totalorder %s248, %s249
    %p258 = scmp.eq.s32.totalorder %s28, 0
    %p259 = por %p257, %p258
    %p260 = scmp.ne.s32.totalorder %s248, %s249
    %p261 = scmp.eq.s32.totalorder %s29, 1
    %p262 = por %p260, %p261
    %p264 = scmp.ne.s32.totalorder %s249, %s263
    %p265 = scmp.eq.s32.totalorder %s29, 0
    %p266 = por %p264, %p265
    %s268 = sadd.s32 %s267, 1
    %p271 = scmp.eq.s32.totalorder %s23, 1
    %p272 = scmp.ne.s32.totalorder %s267, %s269
    %p273 = scmp.eq.s32.totalorder %s23, 0
    %p274 = por %p272, %p273
    %p275 = scmp.ne.s32.totalorder %s267, %s269
    %p276 = scmp.eq.s32.totalorder %s28, 1
    %p277 = por %p275, %p276
    %p278 = scmp.ne.s32.totalorder %s269, %s270
    %p279 = scmp.eq.s32.totalorder %s28, 0
    %p280 = por %p278, %p279
    %p281 = scmp.ne.s32.totalorder %s269, %s270
    %p282 = scmp.eq.s32.totalorder %s29, 1
    %p283 = por %p281, %p282
    %p285 = scmp.ne.s32.totalorder %s270, %s284
    %p286 = scmp.eq.s32.totalorder %s29, 0
    %p287 = por %p285, %p286
    %s289 = sadd.s32 %s288, 1
    %p292 = scmp.eq.s32.totalorder %s23, 1
    %p293 = scmp.ne.s32.totalorder %s288, %s290
    %p294 = scmp.eq.s32.totalorder %s23, 0
    %p295 = por %p293, %p294
    %p296 = scmp.ne.s32.totalorder %s288, %s290
    %p297 = scmp.eq.s32.totalorder %s28, 1
    %p298 = por %p296, %p297
    %p299 = scmp.ne.s32.totalorder %s290, %s291
    %p300 = scmp.eq.s32.totalorder %s28, 0
    %p301 = por %p299, %p300
    %p302 = scmp.ne.s32.totalorder %s290, %s291
    %p303 = scmp.eq.s32.totalorder %s29, 1
    %p304 = por %p302, %p303
    %p306 = scmp.ne.s32.totalorder %s291, %s305
    %p307 = scmp.eq.s32.totalorder %s29, 0
    %p308 = por %p306, %p307
    %s310 = sadd.s32 %s309, 1
    %p313 = scmp.eq.s32.totalorder %s23, 1
    %p314 = scmp.ne.s32.totalorder %s309, %s311
    %p315 = scmp.eq.s32.totalorder %s23, 0
    %p316 = por %p314, %p315
    %p317 = scmp.ne.s32.totalorder %s309, %s311
    %p318 = scmp.eq.s32.totalorder %s28, 1
    %p319 = por %p317, %p318
    %p320 = scmp.ne.s32.totalorder %s311, %s312
    %p321 = scmp.eq.s32.totalorder %s28, 0
    %p322 = por %p320, %p321
    %p323 = scmp.ne.s32.totalorder %s311, %s312
    %p324 = scmp.eq.s32.totalorder %s29, 1
    %p325 = por %p323, %p324
    %p327 = scmp.ne.s32.totalorder %s312, %s326
    %p328 = scmp.eq.s32.totalorder %s29, 0
    %p329 = por %p327, %p328
    %s331 = sadd.s32 %s330, 1
    %p334 = scmp.eq.s32.totalorder %s23, 1
    %p335 = scmp.ne.s32.totalorder %s330, %s332
    %p336 = scmp.eq.s32.totalorder %s23, 0
    %p337 = por %p335, %p336
    %p338 = scmp.ne.s32.totalorder %s330, %s332
    %p339 = scmp.eq.s32.totalorder %s28, 1
    %p340 = por %p338, %p339
    %p341 = scmp.ne.s32.totalorder %s332, %s333
    %p342 = scmp.eq.s32.totalorder %s28, 0
    %p343 = por %p341, %p342
    %p344 = scmp.ne.s32.totalorder %s332, %s333
    %p345 = scmp.eq.s32.totalorder %s29, 1
    %p346 = por %p344, %p345
    %p348 = scmp.ne.s32.totalorder %s333, %s347
    %p349 = scmp.eq.s32.totalorder %s29, 0
    %p350 = por %p348, %p349
    %s352 = sadd.s32 %s351, 1
    %p355 = scmp.eq.s32.totalorder %s23, 1
    %p356 = scmp.ne.s32.totalorder %s351, %s353
    %p357 = scmp.eq.s32.totalorder %s23, 0
    %p358 = por %p356, %p357
    %p359 = scmp.ne.s32.totalorder %s351, %s353
    %p360 = scmp.eq.s32.totalorder %s28, 1
    %p361 = por %p359, %p360
    %p362 = scmp.ne.s32.totalorder %s353, %s354
    %p363 = scmp.eq.s32.totalorder %s28, 0
    %p364 = por %p362, %p363
    %p365 = scmp.ne.s32.totalorder %s353, %s354
    %p366 = scmp.eq.s32.totalorder %s29, 1
    %p367 = por %p365, %p366
    %p369 = scmp.ne.s32.totalorder %s354, %s368
    %p370 = scmp.eq.s32.totalorder %s29, 0
    %p371 = por %p369, %p370
    %s373 = sadd.s32 %s372, 1
    %p376 = scmp.eq.s32.totalorder %s23, 1
    %p377 = scmp.ne.s32.totalorder %s372, %s374
    %p378 = scmp.eq.s32.totalorder %s23, 0
    %p379 = por %p377, %p378
    %p380 = scmp.ne.s32.totalorder %s372, %s374
    %p381 = scmp.eq.s32.totalorder %s28, 1
    %p382 = por %p380, %p381
    %p383 = scmp.ne.s32.totalorder %s374, %s375
    %p384 = scmp.eq.s32.totalorder %s28, 0
    %p385 = por %p383, %p384
    %p386 = scmp.ne.s32.totalorder %s374, %s375
    %p387 = scmp.eq.s32.totalorder %s29, 1
    %p388 = por %p386, %p387
    %p390 = scmp.ne.s32.totalorder %s375, %s389
    %p391 = scmp.eq.s32.totalorder %s29, 0
    %p392 = por %p390, %p391
    %s393 = ssub.s32 %s23, %s30
    %p394 = scmp.eq.s32.totalorder %s393, 0
    %s396 = sadd.s32 %s395, 1
    %s397 = scalar_select %p394, %s395, %s396
    %p400 = pneg %p394
    %p401 = scmp.eq.s32.totalorder %s23, 1
    %p402 = por %p400, %p401
    %p403 = scmp.ne.s32.totalorder %s395, %s398
    %p404 = scmp.eq.s32.totalorder %s23, 0
    %p405 = por %p403, %p404
    %p406 = scmp.ne.s32.totalorder %s395, %s398
    %p407 = scmp.eq.s32.totalorder %s28, 1
    %p408 = por %p406, %p407
    %p409 = scmp.ne.s32.totalorder %s398, %s399
    %p410 = scmp.eq.s32.totalorder %s28, 0
    %p411 = por %p409, %p410
    %p412 = scmp.ne.s32.totalorder %s398, %s399
    %p413 = scmp.eq.s32.totalorder %s29, 1
    %p414 = por %p412, %p413
    %p416 = scmp.ne.s32.totalorder %s399, %s415
    %p417 = scmp.eq.s32.totalorder %s29, 0
    %p418 = por %p416, %p417
    %p419 = scmp.le.s32.totalorder 1, %s23
    %p420 = scmp.lt.s32.totalorder %s23, 3
    %p421 = pnand %p419, %p420
    %p422 = pneg %p421
    // Predicated region
    $region9: #{transformer_encoder_layer.1} parent=5 // pred_check
      _
    $region10: #{transformer_encoder_layer.1} parent=5 // pred_check_branch
      %424 = sbr.rel (%p421) target = $region12
    $region11: #{transformer_encoder_layer.1} parent=5 // pred_region
      %s425 = ssub.s32 %s23, 1
      // Predicated region
      $region13: #{transformer_encoder_layer.1} parent=11 // pred_check
        %p426 = pneg %p70
      $region14: #{transformer_encoder_layer.1} parent=11 // pred_check_branch
        %428 = sbr.rel (%p426) target = $region16
      $region15: #{transformer_encoder_layer.1} parent=11 // pred_region
        _
      $region16: #{transformer_encoder_layer.1} parent=11 // pred_fallthru
        _
      // Predicated region
      $region17: #{transformer_encoder_layer.1} parent=11 // pred_check
        %p429 = pneg %p91
      $region18: #{transformer_encoder_layer.1} parent=11 // pred_check_branch
        %431 = sbr.rel (%p429) target = $region20
      $region19: #{transformer_encoder_layer.1} parent=11 // pred_region
        _
      $region20: #{transformer_encoder_layer.1} parent=11 // pred_fallthru
        _
      // Predicated region
      $region21: #{transformer_encoder_layer.1} parent=11 // pred_check
        %p432 = pneg %p112
      $region22: #{transformer_encoder_layer.1} parent=11 // pred_check_branch
        %434 = sbr.rel (%p432) target = $region24
      $region23: #{transformer_encoder_layer.1} parent=11 // pred_region
        _
      $region24: #{transformer_encoder_layer.1} parent=11 // pred_fallthru
        _
      // Predicated region
      $region25: #{transformer_encoder_layer.1} parent=11 // pred_check
        %p435 = pneg %p133
      $region26: #{transformer_encoder_layer.1} parent=11 // pred_check_branch
        %437 = sbr.rel (%p435) target = $region28
      $region27: #{transformer_encoder_layer.1} parent=11 // pred_region
        _
      $region28: #{transformer_encoder_layer.1} parent=11 // pred_fallthru
        _
      // Predicated region
      $region29: #{transformer_encoder_layer.1} parent=11 // pred_check
        %p438 = pneg %p154
      $region30: #{transformer_encoder_layer.1} parent=11 // pred_check_branch
        %440 = sbr.rel (%p438) target = $region32
      $region31: #{transformer_encoder_layer.1} parent=11 // pred_region
        _
      $region32: #{transformer_encoder_layer.1} parent=11 // pred_fallthru
        _
      // Predicated region
      $region33: #{transformer_encoder_layer.1} parent=11 // pred_check
        %p441 = pneg %p175
      $region34: #{transformer_encoder_layer.1} parent=11 // pred_check_branch
        %443 = sbr.rel (%p441) target = $region36
      $region35: #{transformer_encoder_layer.1} parent=11 // pred_region
        _
      $region36: #{transformer_encoder_layer.1} parent=11 // pred_fallthru
        _
      // Predicated region
      $region37: #{transformer_encoder_layer.1} parent=11 // pred_check
        %p444 = pneg %p196
      $region38: #{transformer_encoder_layer.1} parent=11 // pred_check_branch
        %446 = sbr.rel (%p444) target = $region40
      $region39: #{transformer_encoder_layer.1} parent=11 // pred_region
        _
      $region40: #{transformer_encoder_layer.1} parent=11 // pred_fallthru
        _
      // Predicated region
      $region41: #{transformer_encoder_layer.1} parent=11 // pred_check
        %p447 = pneg %p217
      $region42: #{transformer_encoder_layer.1} parent=11 // pred_check_branch
        %449 = sbr.rel (%p447) target = $region44
      $region43: #{transformer_encoder_layer.1} parent=11 // pred_region
        _
      $region44: #{transformer_encoder_layer.1} parent=11 // pred_fallthru
        _
      // Predicated region
      $region45: #{transformer_encoder_layer.1} parent=11 // pred_check
        %p450 = pneg %p238
      $region46: #{transformer_encoder_layer.1} parent=11 // pred_check_branch
        %452 = sbr.rel (%p450) target = $region48
      $region47: #{transformer_encoder_layer.1} parent=11 // pred_region
        _
      $region48: #{transformer_encoder_layer.1} parent=11 // pred_fallthru
        _
      // Predicated region
      $region49: #{transformer_encoder_layer.1} parent=11 // pred_check
        %p453 = pneg %p259
      $region50: #{transformer_encoder_layer.1} parent=11 // pred_check_branch
        %455 = sbr.rel (%p453) target = $region52
      $region51: #{transformer_encoder_layer.1} parent=11 // pred_region
        _
      $region52: #{transformer_encoder_layer.1} parent=11 // pred_fallthru
        _
      // Predicated region
      $region53: #{transformer_encoder_layer.1} parent=11 // pred_check
        %p456 = pneg %p280
      $region54: #{transformer_encoder_layer.1} parent=11 // pred_check_branch
        %458 = sbr.rel (%p456) target = $region56
      $region55: #{transformer_encoder_layer.1} parent=11 // pred_region
        _
      $region56: #{transformer_encoder_layer.1} parent=11 // pred_fallthru
        _
      // Predicated region
      $region57: #{transformer_encoder_layer.1} parent=11 // pred_check
        %p459 = pneg %p301
      $region58: #{transformer_encoder_layer.1} parent=11 // pred_check_branch
        %461 = sbr.rel (%p459) target = $region60
      $region59: #{transformer_encoder_layer.1} parent=11 // pred_region
        _
      $region60: #{transformer_encoder_layer.1} parent=11 // pred_fallthru
        _
      // Predicated region
      $region61: #{transformer_encoder_layer.1} parent=11 // pred_check
        %p462 = pneg %p322
      $region62: #{transformer_encoder_layer.1} parent=11 // pred_check_branch
        %464 = sbr.rel (%p462) target = $region64
      $region63: #{transformer_encoder_layer.1} parent=11 // pred_region
        _
      $region64: #{transformer_encoder_layer.1} parent=11 // pred_fallthru
        _
      // Predicated region
      $region65: #{transformer_encoder_layer.1} parent=11 // pred_check
        %p465 = pneg %p343
      $region66: #{transformer_encoder_layer.1} parent=11 // pred_check_branch
        %467 = sbr.rel (%p465) target = $region68
      $region67: #{transformer_encoder_layer.1} parent=11 // pred_region
        _
      $region68: #{transformer_encoder_layer.1} parent=11 // pred_fallthru
        _
      // Predicated region
      $region69: #{transformer_encoder_layer.1} parent=11 // pred_check
        %p468 = pneg %p364
      $region70: #{transformer_encoder_layer.1} parent=11 // pred_check_branch
        %470 = sbr.rel (%p468) target = $region72
      $region71: #{transformer_encoder_layer.1} parent=11 // pred_region
        _
      $region72: #{transformer_encoder_layer.1} parent=11 // pred_fallthru
        _
      // Predicated region
      $region73: #{transformer_encoder_layer.1} parent=11 // pred_check
        %p471 = pneg %p385
      $region74: #{transformer_encoder_layer.1} parent=11 // pred_check_branch
        %473 = sbr.rel (%p471) target = $region76
      $region75: #{transformer_encoder_layer.1} parent=11 // pred_region
        _
      $region76: #{transformer_encoder_layer.1} parent=11 // pred_fallthru
        _
    $region12: #{transformer_encoder_layer.1} parent=5 // pred_fallthru
      _
    %p474 = scmp.lt.s32.totalorder %s23, 2
    // Predicated region
    $region77: #{transformer_encoder_layer.1} parent=5 // pred_check
      %p475 = pneg %p474
    $region78: #{transformer_encoder_layer.1} parent=5 // pred_check_branch
      %477 = sbr.rel (%p475) target = $region80
    $region79: #{transformer_encoder_layer.1} parent=5 // pred_region
      // Predicated region
      $region81: #{transformer_encoder_layer.1} parent=79 // pred_check
        %p478 = pneg %p43
      $region82: #{transformer_encoder_layer.1} parent=79 // pred_check_branch
        %480 = sbr.rel (%p478) target = $region84
      $region83: #{transformer_encoder_layer.1} parent=79 // pred_region
        %p481 = scmp.lt.s32.totalorder %s23, 1
        %s482 = scalar_select %p481, %s23, 1
        %s483 = smul.addr %s482, 8
        %s484 = scalar_lea.vmem %s0, %s483
      $region84: #{transformer_encoder_layer.1} parent=79 // pred_fallthru
        _
    $region80: #{transformer_encoder_layer.1} parent=5 // pred_fallthru
      _
    %p485 = scmp.le.s32.totalorder 1, %s23
    %p486 = scmp.lt.s32.totalorder %s23, 3
    %p487 = pnand %p485, %p486
    %p488 = pneg %p487
    // Predicated region
    $region85: #{transformer_encoder_layer.1} parent=5 // pred_check
      _
    $region86: #{transformer_encoder_layer.1} parent=5 // pred_check_branch
      %490 = sbr.rel (%p487) target = $region88
    $region87: #{transformer_encoder_layer.1} parent=5 // pred_region
      %s491 = ssub.s32 %s23, 1
      %p492 = scmp.lt.s32.totalorder %s28, 1
      %s493 = scalar_select %p492, %s28, 1
      %s494 = smul.addr %s493, 8
      %s495 = scalar_lea.vmem %s0, %s494
      %p496 = pneg %p49
      %p497 = pneg %p46
      %p498 = pneg %p70
      %p499 = pneg %p67
      %p500 = pneg %p91
      %p501 = pneg %p88
      %p502 = pneg %p112
      %p503 = pneg %p109
      %p504 = pneg %p133
      %p505 = pneg %p130
      %p506 = pneg %p154
      %p507 = pneg %p151
      %p508 = pneg %p175
      %p509 = pneg %p172
      %p510 = pneg %p196
      %p511 = pneg %p193
      %p512 = pneg %p217
      %p513 = pneg %p214
      %p514 = pneg %p238
      %p515 = pneg %p235
      %p516 = pneg %p259
      %p517 = pneg %p256
      %p518 = pneg %p280
      %p519 = pneg %p277
      %p520 = pneg %p301
      %p521 = pneg %p298
      %p522 = pneg %p322
      %p523 = pneg %p319
      %p524 = pneg %p343
      %p525 = pneg %p340
      %p526 = pneg %p364
      %p527 = pneg %p361
      %p528 = pneg %p385
      %p529 = pneg %p382
      %p530 = pneg %p411
      %p531 = pneg %p408
      %p532 = scmp.lt.s32.totalorder %s28, 1
      %s533 = scalar_select %p532, %s28, 1
      %s534 = smul.addr %s533, 8
      %s535 = scalar_lea.vmem %s17, %s534
      %p536 = scmp.lt.s32.totalorder %s28, 1
      %s537 = scalar_select %p536, %s28, 1
      %s538 = smul.addr %s537, 8
      %s539 = scalar_lea.vmem %s0, %s538
      %p540 = scmp.lt.s32.totalorder %s28, 1
      %s541 = scalar_select %p540, %s28, 1
      %s542 = smul.addr %s541, 8
      %s543 = scalar_lea.vmem %s17, %s542
      %v544 = vld [vmem:[%s539] sm:$0xff]
      %v545 = vld [vmem:[%s1] sm:$0xff]
      %v546 = vld [vmem:[%s1 + $0x8] sm:$0xff]
      %v547 = vld [vmem:[%s1 + $0x10] sm:$0xff]
      %v548 = vld [vmem:[%s1 + $0x18] sm:$0xff]
      %v549 = vld [vmem:[%s4] sm:$0x1]
      %v551 = vlaneseq
      %v552 = vshrl.u32 %v551, 7
      %v553 = vsub.s32 0, %v552
      %v554 = vrot.slane %v549, %v553
      %vm556 = vcmask 261120
      %v558 = vsel %vm556, %v544, 0
      %560 = vmatprep.subr.mxu0 0.0
      %561 = vmatpush1.msra.mxu0 0.0
      %562 = vmatprep.subr.mxu0 0.0
      %563 = vmatpush1.msra.mxu0 0.0
      %564 = vmatprep.subr.mxu0 0.0
      %565 = vmatpush1.msra.mxu0 0.0
      %566 = vmatprep.subr.mxu0 0.0
      %567 = vmatpush1.msra.mxu0 0.0
      %568 = vmatprep.subr.mxu0 0.0
      %569 = vmatpush1.msra.mxu0 0.0
      %570 = vmatprep.subr.mxu0 0.0
      %571 = vmatpush1.msra.mxu0 0.0
      %572 = vmatprep.subr.mxu0 0.0
      %573 = vmatpush1.msra.mxu0 0.0
      %574 = vmatprep.subr.mxu0 0.0
      %575 = vmatpush1.msra.mxu0 0.0
      %576 = vmatprep.subr.mxu0 0.0
      %577 = vmatpush1.msra.mxu0 0.0
      %578 = vmatprep.subr.mxu0 0.0
      %579 = vmatpush1.msra.mxu0 0.0
      %580 = vmatprep.subr.mxu0 0.0
      %581 = vmatpush1.msra.mxu0 0.0
      %582 = vmatprep.subr.mxu0 0.0
      %583 = vmatpush1.msra.mxu0 0.0
      %584 = vmatprep.subr.mxu0 0.0
      %585 = vmatpush1.msra.mxu0 %v548
      %586 = vmatprep.subr.mxu0 0.0
      %587 = vmatpush1.msra.mxu0 %v547
      %588 = vmatprep.subr.mxu0 0.0
      %589 = vmatpush1.msra.mxu0 %v546
      %590 = vmatprep.subr.mxu0 0.0
      %591 = vmatpush1.msra.mxu0 %v545
      %592 = vmatprep.subr.mxu0 0.0
      %593 = vmatpush2.msra.mxu0 0.0
      %594 = vmatprep.subr.mxu0 0.0
      %595 = vmatpush2.msra.mxu0 0.0
      %596 = vmatprep.subr.mxu0 0.0
      %597 = vmatpush2.msra.mxu0 0.0
      %598 = vmatprep.subr.mxu0 0.0
      %599 = vmatpush2.msra.mxu0 0.0
      %600 = vmatprep.subr.mxu0 0.0
      %601 = vmatpush2.msra.mxu0 0.0
      %602 = vmatprep.subr.mxu0 0.0
      %603 = vmatpush2.msra.mxu0 0.0
      %604 = vmatprep.subr.mxu0 0.0
      %605 = vmatpush2.msra.mxu0 0.0
      %606 = vmatprep.subr.mxu0 0.0
      %607 = vmatpush2.msra.mxu0 0.0
      %608 = vmatprep.subr.mxu0 0.0
      %609 = vmatpush2.msra.mxu0 0.0
      %610 = vmatprep.subr.mxu0 0.0
      %611 = vmatpush2.msra.mxu0 0.0
      %612 = vmatprep.subr.mxu0 0.0
      %613 = vmatpush2.msra.mxu0 0.0
      %614 = vmatprep.subr.mxu0 0.0
      %615 = vmatpush2.msra.mxu0 0.0
      %616 = vmatprep.subr.mxu0 0.0
      %617 = vmatpush2.msra.mxu0 0.0
      %618 = vmatprep.subr.mxu0 0.0
      %619 = vmatpush2.msra.mxu0 0.0
      %620 = vmatprep.subr.mxu0 0.0
      %621 = vmatpush2.msra.mxu0 0.0
      %622 = vmatprep.subr.mxu0 0.0
      %623 = vmatpush2.msra.mxu0 0.0
      %624 = vmatprep.mubr.f32.mxu0 0.0
      %625 = vmatmul.mubr.f32.gmra.mxu0 %v558
      %v626 = vpop.f32.mrf.mxu0
      %v627 = vadd.f32 %v554, %v626
      %v628 = vpop.f32.mrf.mxu0
      %629 = vdwg.mxu0
      %v630 = vmul.f32 %v627, 0.35355338
      %v631 = vld [vmem:[%s2] sm:$0xff]
      %v632 = vld [vmem:[%s2 + $0x8] sm:$0xff]
      %v633 = vld [vmem:[%s2 + $0x10] sm:$0xff]
      %v634 = vld [vmem:[%s2 + $0x18] sm:$0xff]
      %v635 = vld [vmem:[%s5] sm:$0x1]
      %v637 = vlaneseq
      %v638 = vshrl.u32 %v637, 7
      %v639 = vsub.s32 0, %v638
      %v640 = vrot.slane %v635, %v639
      %642 = vmatprep.subr.mxu0 0.0
      %643 = vmatpush1.msra.mxu0 0.0
      %644 = vmatprep.subr.mxu0 0.0
      %645 = vmatpush1.msra.mxu0 0.0
      %646 = vmatprep.subr.mxu0 0.0
      %647 = vmatpush1.msra.mxu0 0.0
      %648 = vmatprep.subr.mxu0 0.0
      %649 = vmatpush1.msra.mxu0 0.0
      %650 = vmatprep.subr.mxu0 0.0
      %651 = vmatpush1.msra.mxu0 0.0
      %652 = vmatprep.subr.mxu0 0.0
      %653 = vmatpush1.msra.mxu0 0.0
      %654 = vmatprep.subr.mxu0 0.0
      %655 = vmatpush1.msra.mxu0 0.0
      %656 = vmatprep.subr.mxu0 0.0
      %657 = vmatpush1.msra.mxu0 0.0
      %658 = vmatprep.subr.mxu0 0.0
      %659 = vmatpush1.msra.mxu0 0.0
      %660 = vmatprep.subr.mxu0 0.0
      %661 = vmatpush1.msra.mxu0 0.0
      %662 = vmatprep.subr.mxu0 0.0
      %663 = vmatpush1.msra.mxu0 0.0
      %664 = vmatprep.subr.mxu0 0.0
      %665 = vmatpush1.msra.mxu0 0.0
      %666 = vmatprep.subr.mxu0 0.0
      %667 = vmatpush1.msra.mxu0 %v634
      %668 = vmatprep.subr.mxu0 0.0
      %669 = vmatpush1.msra.mxu0 %v633
      %670 = vmatprep.subr.mxu0 0.0
      %671 = vmatpush1.msra.mxu0 %v632
      %672 = vmatprep.subr.mxu0 0.0
      %673 = vmatpush1.msra.mxu0 %v631
      %674 = vmatprep.subr.mxu0 0.0
      %675 = vmatpush2.msra.mxu0 0.0
      %676 = vmatprep.subr.mxu0 0.0
      %677 = vmatpush2.msra.mxu0 0.0
      %678 = vmatprep.subr.mxu0 0.0
      %679 = vmatpush2.msra.mxu0 0.0
      %680 = vmatprep.subr.mxu0 0.0
      %681 = vmatpush2.msra.mxu0 0.0
      %682 = vmatprep.subr.mxu0 0.0
      %683 = vmatpush2.msra.mxu0 0.0
      %684 = vmatprep.subr.mxu0 0.0
      %685 = vmatpush2.msra.mxu0 0.0
      %686 = vmatprep.subr.mxu0 0.0
      %687 = vmatpush2.msra.mxu0 0.0
      %688 = vmatprep.subr.mxu0 0.0
      %689 = vmatpush2.msra.mxu0 0.0
      %690 = vmatprep.subr.mxu0 0.0
      %691 = vmatpush2.msra.mxu0 0.0
      %692 = vmatprep.subr.mxu0 0.0
      %693 = vmatpush2.msra.mxu0 0.0
      %694 = vmatprep.subr.mxu0 0.0
      %695 = vmatpush2.msra.mxu0 0.0
      %696 = vmatprep.subr.mxu0 0.0
      %697 = vmatpush2.msra.mxu0 0.0
      %698 = vmatprep.subr.mxu0 0.0
      %699 = vmatpush2.msra.mxu0 0.0
      %700 = vmatprep.subr.mxu0 0.0
      %701 = vmatpush2.msra.mxu0 0.0
      %702 = vmatprep.subr.mxu0 0.0
      %703 = vmatpush2.msra.mxu0 0.0
      %704 = vmatprep.subr.mxu0 0.0
      %705 = vmatpush2.msra.mxu0 0.0
      %706 = vmatprep.mubr.f32.mxu0 0.0
      %707 = vmatmul.mubr.f32.gmra.mxu0 %v558
      %v708 = vpop.f32.mrf.mxu0
      %v709 = vadd.f32 %v640, %v708
      %v710 = vpop.f32.mrf.mxu0
      %711 = vdwg.mxu0
      %v712 = vld [vmem:[%s3] sm:$0xff]
      %v713 = vld [vmem:[%s3 + $0x8] sm:$0xff]
      %v714 = vld [vmem:[%s3 + $0x10] sm:$0xff]
      %v715 = vld [vmem:[%s3 + $0x18] sm:$0xff]
      %v716 = vld [vmem:[%s6] sm:$0x1]
      %v718 = vlaneseq
      %v719 = vshrl.u32 %v718, 7
      %v720 = vsub.s32 0, %v719
      %v721 = vrot.slane %v716, %v720
      %723 = vmatprep.subr.mxu0 0.0
      %724 = vmatpush1.msra.mxu0 0.0
      %725 = vmatprep.subr.mxu0 0.0
      %726 = vmatpush1.msra.mxu0 0.0
      %727 = vmatprep.subr.mxu0 0.0
      %728 = vmatpush1.msra.mxu0 0.0
      %729 = vmatprep.subr.mxu0 0.0
      %730 = vmatpush1.msra.mxu0 0.0
      %731 = vmatprep.subr.mxu0 0.0
      %732 = vmatpush1.msra.mxu0 0.0
      %733 = vmatprep.subr.mxu0 0.0
      %734 = vmatpush1.msra.mxu0 0.0
      %735 = vmatprep.subr.mxu0 0.0
      %736 = vmatpush1.msra.mxu0 0.0
      %737 = vmatprep.subr.mxu0 0.0
      %738 = vmatpush1.msra.mxu0 0.0
      %739 = vmatprep.subr.mxu0 0.0
      %740 = vmatpush1.msra.mxu0 0.0
      %741 = vmatprep.subr.mxu0 0.0
      %742 = vmatpush1.msra.mxu0 0.0
      %743 = vmatprep.subr.mxu0 0.0
      %744 = vmatpush1.msra.mxu0 0.0
      %745 = vmatprep.subr.mxu0 0.0
      %746 = vmatpush1.msra.mxu0 0.0
      %747 = vmatprep.subr.mxu0 0.0
      %748 = vmatpush1.msra.mxu0 %v715
      %749 = vmatprep.subr.mxu0 0.0
      %750 = vmatpush1.msra.mxu0 %v714
      %751 = vmatprep.subr.mxu0 0.0
      %752 = vmatpush1.msra.mxu0 %v713
      %753 = vmatprep.subr.mxu0 0.0
      %754 = vmatpush1.msra.mxu0 %v712
      %755 = vmatprep.subr.mxu0 0.0
      %756 = vmatpush2.msra.mxu0 0.0
      %757 = vmatprep.subr.mxu0 0.0
      %758 = vmatpush2.msra.mxu0 0.0
      %759 = vmatprep.subr.mxu0 0.0
      %760 = vmatpush2.msra.mxu0 0.0
      %761 = vmatprep.subr.mxu0 0.0
      %762 = vmatpush2.msra.mxu0 0.0
      %763 = vmatprep.subr.mxu0 0.0
      %764 = vmatpush2.msra.mxu0 0.0
      %765 = vmatprep.subr.mxu0 0.0
      %766 = vmatpush2.msra.mxu0 0.0
      %767 = vmatprep.subr.mxu0 0.0
      %768 = vmatpush2.msra.mxu0 0.0
      %769 = vmatprep.subr.mxu0 0.0
      %770 = vmatpush2.msra.mxu0 0.0
      %771 = vmatprep.subr.mxu0 0.0
      %772 = vmatpush2.msra.mxu0 0.0
      %773 = vmatprep.subr.mxu0 0.0
      %774 = vmatpush2.msra.mxu0 0.0
      %775 = vmatprep.subr.mxu0 0.0
      %776 = vmatpush2.msra.mxu0 0.0
      %777 = vmatprep.subr.mxu0 0.0
      %778 = vmatpush2.msra.mxu0 0.0
      %779 = vmatprep.subr.mxu0 0.0
      %780 = vmatpush2.msra.mxu0 0.0
      %781 = vmatprep.subr.mxu0 0.0
      %782 = vmatpush2.msra.mxu0 0.0
      %783 = vmatprep.subr.mxu0 0.0
      %784 = vmatpush2.msra.mxu0 0.0
      %785 = vmatprep.subr.mxu0 0.0
      %786 = vmatpush2.msra.mxu0 0.0
      %787 = vmatprep.mubr.f32.mxu0 0.0
      %788 = vmatmul.mubr.f32.gmra.mxu0 %v558
      %v789 = vpop.f32.mrf.mxu0
      %v790 = vadd.f32 %v721, %v789
      %v791 = vpop.f32.mrf.mxu0
      %792 = vdwg.mxu0
      %v793 = vld [vmem:[%s7] sm:$0xff]
      %v794 = vld [vmem:[%s7 + $0x8] sm:$0xff]
      %v795 = vld [vmem:[%s7 + $0x10] sm:$0xff]
      %v796 = vld [vmem:[%s7 + $0x18] sm:$0xff]
      %vm797 = vcmask 64512
      %v799 = vsel %vm797, %v630, 0
      %v802 = vsel %vm797, %v709, 0
      %804 = vmatprep.subr.mxu0 0.0
      %805 = vmatpush1.xpose.msra.mxu0 0.0
      %806 = vmatprep.subr.mxu0 0.0
      %807 = vmatpush1.xpose.msra.mxu0 0.0
      %808 = vmatprep.subr.mxu0 0.0
      %809 = vmatpush1.xpose.msra.mxu0 0.0
      %810 = vmatprep.subr.mxu0 0.0
      %811 = vmatpush1.xpose.msra.mxu0 0.0
      %812 = vmatprep.subr.mxu0 0.0
      %813 = vmatpush1.xpose.msra.mxu0 0.0
      %814 = vmatprep.subr.mxu0 0.0
      %815 = vmatpush1.xpose.msra.mxu0 0.0
      %816 = vmatprep.subr.mxu0 0.0
      %817 = vmatpush1.xpose.msra.mxu0 0.0
      %818 = vmatprep.subr.mxu0 0.0
      %819 = vmatpush1.xpose.msra.mxu0 0.0
      %820 = vmatprep.subr.mxu0 0.0
      %821 = vmatpush1.xpose.msra.mxu0 0.0
      %822 = vmatprep.subr.mxu0 0.0
      %823 = vmatpush1.xpose.msra.mxu0 0.0
      %824 = vmatprep.subr.mxu0 0.0
      %825 = vmatpush1.xpose.msra.mxu0 0.0
      %826 = vmatprep.subr.mxu0 0.0
      %827 = vmatpush1.xpose.msra.mxu0 0.0
      %828 = vmatprep.subr.mxu0 0.0
      %829 = vmatpush1.xpose.msra.mxu0 0.0
      %830 = vmatprep.subr.mxu0 0.0
      %831 = vmatpush1.xpose.msra.mxu0 0.0
      %832 = vmatprep.subr.mxu0 0.0
      %833 = vmatpush1.xpose.msra.mxu0 0.0
      %834 = vmatprep.subr.mxu0 0.0
      %835 = vmatpush1.xpose.msra.mxu0 %v802
      %836 = vmatprep.subr.mxu0 0.0
      %837 = vmatpush2.xpose.msra.mxu0 0.0
      %838 = vmatprep.subr.mxu0 0.0
      %839 = vmatpush2.xpose.msra.mxu0 0.0
      %840 = vmatprep.subr.mxu0 0.0
      %841 = vmatpush2.xpose.msra.mxu0 0.0
      %842 = vmatprep.subr.mxu0 0.0
      %843 = vmatpush2.xpose.msra.mxu0 0.0
      %844 = vmatprep.subr.mxu0 0.0
      %845 = vmatpush2.xpose.msra.mxu0 0.0
      %846 = vmatprep.subr.mxu0 0.0
      %847 = vmatpush2.xpose.msra.mxu0 0.0
      %848 = vmatprep.subr.mxu0 0.0
      %849 = vmatpush2.xpose.msra.mxu0 0.0
      %850 = vmatprep.subr.mxu0 0.0
      %851 = vmatpush2.xpose.msra.mxu0 0.0
      %852 = vmatprep.subr.mxu0 0.0
      %853 = vmatpush2.xpose.msra.mxu0 0.0
      %854 = vmatprep.subr.mxu0 0.0
      %855 = vmatpush2.xpose.msra.mxu0 0.0
      %856 = vmatprep.subr.mxu0 0.0
      %857 = vmatpush2.xpose.msra.mxu0 0.0
      %858 = vmatprep.subr.mxu0 0.0
      %859 = vmatpush2.xpose.msra.mxu0 0.0
      %860 = vmatprep.subr.mxu0 0.0
      %861 = vmatpush2.xpose.msra.mxu0 0.0
      %862 = vmatprep.subr.mxu0 0.0
      %863 = vmatpush2.xpose.msra.mxu0 0.0
      %864 = vmatprep.subr.mxu0 0.0
      %865 = vmatpush2.xpose.msra.mxu0 0.0
      %866 = vmatprep.subr.mxu0 0.0
      %867 = vmatpush2.xpose.msra.mxu0 0.0
      %868 = vmatprep.mubr.f32.mxu0 0.0
      %869 = vmatmul.mubr.f32.gmra.mxu0 %v799
      %v870 = vpop.f32.mrf.mxu0
      %v871 = vadd.f32 0.0, %v870
      %v872 = vpop.f32.mrf.mxu0
      %873 = vdwg.mxu0
      %v874 = vsel %vm797, %v871, -inf
      %875 = vmax.xlane.f32.xlu0 %v874
      %v876 = vpop.xlane.xlu0 %875
      %v877 = vsub.f32 %v871, %v876
      %v878 = vmul.f32 %v877, 1.442695
      %v879 = vpow.pop %v878
      %v880 = vsel %vm797, %v879, 0.0
      %881 = vadd.xlane.f32.xlu0 %v880
      %v882 = vpop.xlane.xlu0 %881
      %v883 = vrcp.pop %v882
      %v884 = vmul.f32 %v879, %v883
      %v886 = vsel %vm797, %v884, 0
      %888 = vmatprep.subr.mxu0 0.0
      %889 = vmatpush1.msra.mxu0 0.0
      %890 = vmatprep.subr.mxu0 0.0
      %891 = vmatpush1.msra.mxu0 0.0
      %892 = vmatprep.subr.mxu0 0.0
      %893 = vmatpush1.msra.mxu0 0.0
      %894 = vmatprep.subr.mxu0 0.0
      %895 = vmatpush1.msra.mxu0 0.0
      %896 = vmatprep.subr.mxu0 0.0
      %897 = vmatpush1.msra.mxu0 0.0
      %898 = vmatprep.subr.mxu0 0.0
      %899 = vmatpush1.msra.mxu0 0.0
      %900 = vmatprep.subr.mxu0 0.0
      %901 = vmatpush1.msra.mxu0 0.0
      %902 = vmatprep.subr.mxu0 0.0
      %903 = vmatpush1.msra.mxu0 0.0
      %904 = vmatprep.subr.mxu0 0.0
      %905 = vmatpush1.msra.mxu0 0.0
      %906 = vmatprep.subr.mxu0 0.0
      %907 = vmatpush1.msra.mxu0 0.0
      %908 = vmatprep.subr.mxu0 0.0
      %909 = vmatpush1.msra.mxu0 0.0
      %910 = vmatprep.subr.mxu0 0.0
      %911 = vmatpush1.msra.mxu0 0.0
      %912 = vmatprep.subr.mxu0 0.0
      %913 = vmatpush1.msra.mxu0 0.0
      %914 = vmatprep.subr.mxu0 0.0
      %915 = vmatpush1.msra.mxu0 0.0
      %916 = vmatprep.subr.mxu0 0.0
      %917 = vmatpush1.msra.mxu0 0.0
      %918 = vmatprep.subr.mxu0 0.0
      %919 = vmatpush1.msra.mxu0 %v790
      %920 = vmatprep.subr.mxu0 0.0
      %921 = vmatpush2.msra.mxu0 0.0
      %922 = vmatprep.subr.mxu0 0.0
      %923 = vmatpush2.msra.mxu0 0.0
      %924 = vmatprep.subr.mxu0 0.0
      %925 = vmatpush2.msra.mxu0 0.0
      %926 = vmatprep.subr.mxu0 0.0
      %927 = vmatpush2.msra.mxu0 0.0
      %928 = vmatprep.subr.mxu0 0.0
      %929 = vmatpush2.msra.mxu0 0.0
      %930 = vmatprep.subr.mxu0 0.0
      %931 = vmatpush2.msra.mxu0 0.0
      %932 = vmatprep.subr.mxu0 0.0
      %933 = vmatpush2.msra.mxu0 0.0
      %934 = vmatprep.subr.mxu0 0.0
      %935 = vmatpush2.msra.mxu0 0.0
      %936 = vmatprep.subr.mxu0 0.0
      %937 = vmatpush2.msra.mxu0 0.0
      %938 = vmatprep.subr.mxu0 0.0
      %939 = vmatpush2.msra.mxu0 0.0
      %940 = vmatprep.subr.mxu0 0.0
      %941 = vmatpush2.msra.mxu0 0.0
      %942 = vmatprep.subr.mxu0 0.0
      %943 = vmatpush2.msra.mxu0 0.0
      %944 = vmatprep.subr.mxu0 0.0
      %945 = vmatpush2.msra.mxu0 0.0
      %946 = vmatprep.subr.mxu0 0.0
      %947 = vmatpush2.msra.mxu0 0.0
      %948 = vmatprep.subr.mxu0 0.0
      %949 = vmatpush2.msra.mxu0 0.0
      %950 = vmatprep.subr.mxu0 0.0
      %951 = vmatpush2.msra.mxu0 0.0
      %952 = vmatprep.mubr.f32.mxu0 0.0
      %953 = vmatmul.mubr.f32.gmra.mxu0 %v886
      %v954 = vpop.f32.mrf.mxu0
      %v955 = vadd.f32 0.0, %v954
      %v956 = vpop.f32.mrf.mxu0
      %957 = vdwg.mxu0
      %958 = vrot.lane.b32.xlu0 %v630, 120
      %v959 = vpop.permute.xlu0 %958
      %960 = vrot.lane.b32.xlu0 %v709, 120
      %v961 = vpop.permute.xlu0 %960
      %v962 = vsel %vm797, %v959, 0
      %v964 = vsel %vm797, %v961, 0
      %966 = vmatprep.subr.mxu0 0.0
      %967 = vmatpush1.xpose.msra.mxu0 0.0
      %968 = vmatprep.subr.mxu0 0.0
      %969 = vmatpush1.xpose.msra.mxu0 0.0
      %970 = vmatprep.subr.mxu0 0.0
      %971 = vmatpush1.xpose.msra.mxu0 0.0
      %972 = vmatprep.subr.mxu0 0.0
      %973 = vmatpush1.xpose.msra.mxu0 0.0
      %974 = vmatprep.subr.mxu0 0.0
      %975 = vmatpush1.xpose.msra.mxu0 0.0
      %976 = vmatprep.subr.mxu0 0.0
      %977 = vmatpush1.xpose.msra.mxu0 0.0
      %978 = vmatprep.subr.mxu0 0.0
      %979 = vmatpush1.xpose.msra.mxu0 0.0
      %980 = vmatprep.subr.mxu0 0.0
      %981 = vmatpush1.xpose.msra.mxu0 0.0
      %982 = vmatprep.subr.mxu0 0.0
      %983 = vmatpush1.xpose.msra.mxu0 0.0
      %984 = vmatprep.subr.mxu0 0.0
      %985 = vmatpush1.xpose.msra.mxu0 0.0
      %986 = vmatprep.subr.mxu0 0.0
      %987 = vmatpush1.xpose.msra.mxu0 0.0
      %988 = vmatprep.subr.mxu0 0.0
      %989 = vmatpush1.xpose.msra.mxu0 0.0
      %990 = vmatprep.subr.mxu0 0.0
      %991 = vmatpush1.xpose.msra.mxu0 0.0
      %992 = vmatprep.subr.mxu0 0.0
      %993 = vmatpush1.xpose.msra.mxu0 0.0
      %994 = vmatprep.subr.mxu0 0.0
      %995 = vmatpush1.xpose.msra.mxu0 0.0
      %996 = vmatprep.subr.mxu0 0.0
      %997 = vmatpush1.xpose.msra.mxu0 %v964
      %998 = vmatprep.subr.mxu0 0.0
      %999 = vmatpush2.xpose.msra.mxu0 0.0
      %1000 = vmatprep.subr.mxu0 0.0
      %1001 = vmatpush2.xpose.msra.mxu0 0.0
      %1002 = vmatprep.subr.mxu0 0.0
      %1003 = vmatpush2.xpose.msra.mxu0 0.0
      %1004 = vmatprep.subr.mxu0 0.0
      %1005 = vmatpush2.xpose.msra.mxu0 0.0
      %1006 = vmatprep.subr.mxu0 0.0
      %1007 = vmatpush2.xpose.msra.mxu0 0.0
      %1008 = vmatprep.subr.mxu0 0.0
      %1009 = vmatpush2.xpose.msra.mxu0 0.0
      %1010 = vmatprep.subr.mxu0 0.0
      %1011 = vmatpush2.xpose.msra.mxu0 0.0
      %1012 = vmatprep.subr.mxu0 0.0
      %1013 = vmatpush2.xpose.msra.mxu0 0.0
      %1014 = vmatprep.subr.mxu0 0.0
      %1015 = vmatpush2.xpose.msra.mxu0 0.0
      %1016 = vmatprep.subr.mxu0 0.0
      %1017 = vmatpush2.xpose.msra.mxu0 0.0
      %1018 = vmatprep.subr.mxu0 0.0
      %1019 = vmatpush2.xpose.msra.mxu0 0.0
      %1020 = vmatprep.subr.mxu0 0.0
      %1021 = vmatpush2.xpose.msra.mxu0 0.0
      %1022 = vmatprep.subr.mxu0 0.0
      %1023 = vmatpush2.xpose.msra.mxu0 0.0
      %1024 = vmatprep.subr.mxu0 0.0
      %1025 = vmatpush2.xpose.msra.mxu0 0.0
      %1026 = vmatprep.subr.mxu0 0.0
      %1027 = vmatpush2.xpose.msra.mxu0 0.0
      %1028 = vmatprep.subr.mxu0 0.0
      %1029 = vmatpush2.xpose.msra.mxu0 0.0
      %1030 = vmatprep.mubr.f32.mxu0 0.0
      %1031 = vmatmul.mubr.f32.gmra.mxu0 %v962
      %v1032 = vpop.f32.mrf.mxu0
      %v1033 = vadd.f32 0.0, %v1032
      %v1034 = vpop.f32.mrf.mxu0
      %1035 = vdwg.mxu0
      %v1036 = vsel %vm797, %v1033, -inf
      %1037 = vmax.xlane.f32.xlu0 %v1036
      %v1038 = vpop.xlane.xlu0 %1037
      %v1039 = vsub.f32 %v1033, %v1038
      %v1040 = vmul.f32 %v1039, 1.442695
      %v1041 = vpow.pop %v1040
      %v1042 = vsel %vm797, %v1041, 0.0
      %1043 = vadd.xlane.f32.xlu0 %v1042
      %v1044 = vpop.xlane.xlu0 %1043
      %v1045 = vrcp.pop %v1044
      %v1046 = vmul.f32 %v1041, %v1045
      %1048 = vrot.lane.b32.xlu0 %v790, 120
      %v1049 = vpop.permute.xlu0 %1048
      %v1052 = vsel %vm797, %v1046, 0
      %1054 = vmatprep.subr.mxu0 0.0
      %1055 = vmatpush1.msra.mxu0 0.0
      %1056 = vmatprep.subr.mxu0 0.0
      %1057 = vmatpush1.msra.mxu0 0.0
      %1058 = vmatprep.subr.mxu0 0.0
      %1059 = vmatpush1.msra.mxu0 0.0
      %1060 = vmatprep.subr.mxu0 0.0
      %1061 = vmatpush1.msra.mxu0 0.0
      %1062 = vmatprep.subr.mxu0 0.0
      %1063 = vmatpush1.msra.mxu0 0.0
      %1064 = vmatprep.subr.mxu0 0.0
      %1065 = vmatpush1.msra.mxu0 0.0
      %1066 = vmatprep.subr.mxu0 0.0
      %1067 = vmatpush1.msra.mxu0 0.0
      %1068 = vmatprep.subr.mxu0 0.0
      %1069 = vmatpush1.msra.mxu0 0.0
      %1070 = vmatprep.subr.mxu0 0.0
      %1071 = vmatpush1.msra.mxu0 0.0
      %1072 = vmatprep.subr.mxu0 0.0
      %1073 = vmatpush1.msra.mxu0 0.0
      %1074 = vmatprep.subr.mxu0 0.0
      %1075 = vmatpush1.msra.mxu0 0.0
      %1076 = vmatprep.subr.mxu0 0.0
      %1077 = vmatpush1.msra.mxu0 0.0
      %1078 = vmatprep.subr.mxu0 0.0
      %1079 = vmatpush1.msra.mxu0 0.0
      %1080 = vmatprep.subr.mxu0 0.0
      %1081 = vmatpush1.msra.mxu0 0.0
      %1082 = vmatprep.subr.mxu0 0.0
      %1083 = vmatpush1.msra.mxu0 0.0
      %1084 = vmatprep.subr.mxu0 0.0
      %1085 = vmatpush1.msra.mxu0 %v1049
      %1086 = vmatprep.subr.mxu0 0.0
      %1087 = vmatpush2.msra.mxu0 0.0
      %1088 = vmatprep.subr.mxu0 0.0
      %1089 = vmatpush2.msra.mxu0 0.0
      %1090 = vmatprep.subr.mxu0 0.0
      %1091 = vmatpush2.msra.mxu0 0.0
      %1092 = vmatprep.subr.mxu0 0.0
      %1093 = vmatpush2.msra.mxu0 0.0
      %1094 = vmatprep.subr.mxu0 0.0
      %1095 = vmatpush2.msra.mxu0 0.0
      %1096 = vmatprep.subr.mxu0 0.0
      %1097 = vmatpush2.msra.mxu0 0.0
      %1098 = vmatprep.subr.mxu0 0.0
      %1099 = vmatpush2.msra.mxu0 0.0
      %1100 = vmatprep.subr.mxu0 0.0
      %1101 = vmatpush2.msra.mxu0 0.0
      %1102 = vmatprep.subr.mxu0 0.0
      %1103 = vmatpush2.msra.mxu0 0.0
      %1104 = vmatprep.subr.mxu0 0.0
      %1105 = vmatpush2.msra.mxu0 0.0
      %1106 = vmatprep.subr.mxu0 0.0
      %1107 = vmatpush2.msra.mxu0 0.0
      %1108 = vmatprep.subr.mxu0 0.0
      %1109 = vmatpush2.msra.mxu0 0.0
      %1110 = vmatprep.subr.mxu0 0.0
      %1111 = vmatpush2.msra.mxu0 0.0
      %1112 = vmatprep.subr.mxu0 0.0
      %1113 = vmatpush2.msra.mxu0 0.0
      %1114 = vmatprep.subr.mxu0 0.0
      %1115 = vmatpush2.msra.mxu0 0.0
      %1116 = vmatprep.subr.mxu0 0.0
      %1117 = vmatpush2.msra.mxu0 0.0
      %1118 = vmatprep.mubr.f32.mxu0 0.0
      %1119 = vmatmul.mubr.f32.gmra.mxu0 %v1052
      %v1120 = vpop.f32.mrf.mxu0
      %v1121 = vadd.f32 0.0, %v1120
      %v1122 = vpop.f32.mrf.mxu0
      %1123 = vdwg.mxu0
      %v1125 = vsel %vm797, %v1121, 0
      %1127 = vmatprep.subr.mxu0 0.0
      %1128 = vmatpush1.msra.mxu0 0.0
      %1129 = vmatprep.subr.mxu0 0.0
      %1130 = vmatpush1.msra.mxu0 0.0
      %1131 = vmatprep.subr.mxu0 0.0
      %1132 = vmatpush1.msra.mxu0 0.0
      %1133 = vmatprep.subr.mxu0 0.0
      %1134 = vmatpush1.msra.mxu0 0.0
      %1135 = vmatprep.subr.mxu0 0.0
      %1136 = vmatpush1.msra.mxu0 0.0
      %1137 = vmatprep.subr.mxu0 0.0
      %1138 = vmatpush1.msra.mxu0 0.0
      %1139 = vmatprep.subr.mxu0 0.0
      %1140 = vmatpush1.msra.mxu0 0.0
      %1141 = vmatprep.subr.mxu0 0.0
      %1142 = vmatpush1.msra.mxu0 0.0
      %1143 = vmatprep.subr.mxu0 0.0
      %1144 = vmatpush1.msra.mxu0 0.0
      %1145 = vmatprep.subr.mxu0 0.0
      %1146 = vmatpush1.msra.mxu0 0.0
      %1147 = vmatprep.subr.mxu0 0.0
      %1148 = vmatpush1.msra.mxu0 0.0
      %1149 = vmatprep.subr.mxu0 0.0
      %1150 = vmatpush1.msra.mxu0 0.0
      %1151 = vmatprep.subr.mxu0 0.0
      %1152 = vmatpush1.msra.mxu0 0.0
      %1153 = vmatprep.subr.mxu0 0.0
      %1154 = vmatpush1.msra.mxu0 0.0
      %1155 = vmatprep.subr.mxu0 0.0
      %1156 = vmatpush1.msra.mxu0 0.0
      %1157 = vmatprep.subr.mxu0 0.0
      %1158 = vmatpush1.msra.mxu0 %v794
      %1159 = vmatprep.subr.mxu0 0.0
      %1160 = vmatpush2.msra.mxu0 0.0
      %1161 = vmatprep.subr.mxu0 0.0
      %1162 = vmatpush2.msra.mxu0 0.0
      %1163 = vmatprep.subr.mxu0 0.0
      %1164 = vmatpush2.msra.mxu0 0.0
      %1165 = vmatprep.subr.mxu0 0.0
      %1166 = vmatpush2.msra.mxu0 0.0
      %1167 = vmatprep.subr.mxu0 0.0
      %1168 = vmatpush2.msra.mxu0 0.0
      %1169 = vmatprep.subr.mxu0 0.0
      %1170 = vmatpush2.msra.mxu0 0.0
      %1171 = vmatprep.subr.mxu0 0.0
      %1172 = vmatpush2.msra.mxu0 0.0
      %1173 = vmatprep.subr.mxu0 0.0
      %1174 = vmatpush2.msra.mxu0 0.0
      %1175 = vmatprep.subr.mxu0 0.0
      %1176 = vmatpush2.msra.mxu0 0.0
      %1177 = vmatprep.subr.mxu0 0.0
      %1178 = vmatpush2.msra.mxu0 0.0
      %1179 = vmatprep.subr.mxu0 0.0
      %1180 = vmatpush2.msra.mxu0 0.0
      %1181 = vmatprep.subr.mxu0 0.0
      %1182 = vmatpush2.msra.mxu0 0.0
      %1183 = vmatprep.subr.mxu0 0.0
      %1184 = vmatpush2.msra.mxu0 0.0
      %1185 = vmatprep.subr.mxu0 0.0
      %1186 = vmatpush2.msra.mxu0 0.0
      %1187 = vmatprep.subr.mxu0 0.0
      %1188 = vmatpush2.msra.mxu0 0.0
      %1189 = vmatprep.subr.mxu0 0.0
      %1190 = vmatpush2.msra.mxu0 0.0
      %1191 = vmatprep.mubr.f32.mxu0 0.0
      %1192 = vmatmul.mubr.f32.gmra.mxu0 %v1125
      %v1193 = vpop.f32.mrf.mxu0
      %v1194 = vadd.f32 0.0, %v1193
      %v1195 = vpop.f32.mrf.mxu0
      %1196 = vdwg.mxu0
      %v1198 = vsel %vm797, %v955, 0
      %1200 = vmatprep.subr.mxu0 0.0
      %1201 = vmatpush1.msra.mxu0 0.0
      %1202 = vmatprep.subr.mxu0 0.0
      %1203 = vmatpush1.msra.mxu0 0.0
      %1204 = vmatprep.subr.mxu0 0.0
      %1205 = vmatpush1.msra.mxu0 0.0
      %1206 = vmatprep.subr.mxu0 0.0
      %1207 = vmatpush1.msra.mxu0 0.0
      %1208 = vmatprep.subr.mxu0 0.0
      %1209 = vmatpush1.msra.mxu0 0.0
      %1210 = vmatprep.subr.mxu0 0.0
      %1211 = vmatpush1.msra.mxu0 0.0
      %1212 = vmatprep.subr.mxu0 0.0
      %1213 = vmatpush1.msra.mxu0 0.0
      %1214 = vmatprep.subr.mxu0 0.0
      %1215 = vmatpush1.msra.mxu0 0.0
      %1216 = vmatprep.subr.mxu0 0.0
      %1217 = vmatpush1.msra.mxu0 0.0
      %1218 = vmatprep.subr.mxu0 0.0
      %1219 = vmatpush1.msra.mxu0 0.0
      %1220 = vmatprep.subr.mxu0 0.0
      %1221 = vmatpush1.msra.mxu0 0.0
      %1222 = vmatprep.subr.mxu0 0.0
      %1223 = vmatpush1.msra.mxu0 0.0
      %1224 = vmatprep.subr.mxu0 0.0
      %1225 = vmatpush1.msra.mxu0 0.0
      %1226 = vmatprep.subr.mxu0 0.0
      %1227 = vmatpush1.msra.mxu0 0.0
      %1228 = vmatprep.subr.mxu0 0.0
      %1229 = vmatpush1.msra.mxu0 0.0
      %1230 = vmatprep.subr.mxu0 0.0
      %1231 = vmatpush1.msra.mxu0 %v793
      %1232 = vmatprep.subr.mxu0 0.0
      %1233 = vmatpush2.msra.mxu0 0.0
      %1234 = vmatprep.subr.mxu0 0.0
      %1235 = vmatpush2.msra.mxu0 0.0
      %1236 = vmatprep.subr.mxu0 0.0
      %1237 = vmatpush2.msra.mxu0 0.0
      %1238 = vmatprep.subr.mxu0 0.0
      %1239 = vmatpush2.msra.mxu0 0.0
      %1240 = vmatprep.subr.mxu0 0.0
      %1241 = vmatpush2.msra.mxu0 0.0
      %1242 = vmatprep.subr.mxu0 0.0
      %1243 = vmatpush2.msra.mxu0 0.0
      %1244 = vmatprep.subr.mxu0 0.0
      %1245 = vmatpush2.msra.mxu0 0.0
      %1246 = vmatprep.subr.mxu0 0.0
      %1247 = vmatpush2.msra.mxu0 0.0
      %1248 = vmatprep.subr.mxu0 0.0
      %1249 = vmatpush2.msra.mxu0 0.0
      %1250 = vmatprep.subr.mxu0 0.0
      %1251 = vmatpush2.msra.mxu0 0.0
      %1252 = vmatprep.subr.mxu0 0.0
      %1253 = vmatpush2.msra.mxu0 0.0
      %1254 = vmatprep.subr.mxu0 0.0
      %1255 = vmatpush2.msra.mxu0 0.0
      %1256 = vmatprep.subr.mxu0 0.0
      %1257 = vmatpush2.msra.mxu0 0.0
      %1258 = vmatprep.subr.mxu0 0.0
      %1259 = vmatpush2.msra.mxu0 0.0
      %1260 = vmatprep.subr.mxu0 0.0
      %1261 = vmatpush2.msra.mxu0 0.0
      %1262 = vmatprep.subr.mxu0 0.0
      %1263 = vmatpush2.msra.mxu0 0.0
      %1264 = vmatprep.mubr.f32.mxu0 0.0
      %1265 = vmatmul.mubr.f32.gmra.mxu0 %v1198
      %v1266 = vpop.f32.mrf.mxu0
      %v1267 = vadd.f32 %v1194, %v1266
      %v1268 = vpop.f32.mrf.mxu0
      %1269 = vdwg.mxu0
      %1270 = vrot.lane.b32.xlu0 %v630, 112
      %v1271 = vpop.permute.xlu0 %1270
      %1272 = vrot.lane.b32.xlu0 %v709, 112
      %v1273 = vpop.permute.xlu0 %1272
      %v1274 = vsel %vm797, %v1271, 0
      %v1276 = vsel %vm797, %v1273, 0
      %1278 = vmatprep.subr.mxu0 0.0
      %1279 = vmatpush1.xpose.msra.mxu0 0.0
      %1280 = vmatprep.subr.mxu0 0.0
      %1281 = vmatpush1.xpose.msra.mxu0 0.0
      %1282 = vmatprep.subr.mxu0 0.0
      %1283 = vmatpush1.xpose.msra.mxu0 0.0
      %1284 = vmatprep.subr.mxu0 0.0
      %1285 = vmatpush1.xpose.msra.mxu0 0.0
      %1286 = vmatprep.subr.mxu0 0.0
      %1287 = vmatpush1.xpose.msra.mxu0 0.0
      %1288 = vmatprep.subr.mxu0 0.0
      %1289 = vmatpush1.xpose.msra.mxu0 0.0
      %1290 = vmatprep.subr.mxu0 0.0
      %1291 = vmatpush1.xpose.msra.mxu0 0.0
      %1292 = vmatprep.subr.mxu0 0.0
      %1293 = vmatpush1.xpose.msra.mxu0 0.0
      %1294 = vmatprep.subr.mxu0 0.0
      %1295 = vmatpush1.xpose.msra.mxu0 0.0
      %1296 = vmatprep.subr.mxu0 0.0
      %1297 = vmatpush1.xpose.msra.mxu0 0.0
      %1298 = vmatprep.subr.mxu0 0.0
      %1299 = vmatpush1.xpose.msra.mxu0 0.0
      %1300 = vmatprep.subr.mxu0 0.0
      %1301 = vmatpush1.xpose.msra.mxu0 0.0
      %1302 = vmatprep.subr.mxu0 0.0
      %1303 = vmatpush1.xpose.msra.mxu0 0.0
      %1304 = vmatprep.subr.mxu0 0.0
      %1305 = vmatpush1.xpose.msra.mxu0 0.0
      %1306 = vmatprep.subr.mxu0 0.0
      %1307 = vmatpush1.xpose.msra.mxu0 0.0
      %1308 = vmatprep.subr.mxu0 0.0
      %1309 = vmatpush1.xpose.msra.mxu0 %v1276
      %1310 = vmatprep.subr.mxu0 0.0
      %1311 = vmatpush2.xpose.msra.mxu0 0.0
      %1312 = vmatprep.subr.mxu0 0.0
      %1313 = vmatpush2.xpose.msra.mxu0 0.0
      %1314 = vmatprep.subr.mxu0 0.0
      %1315 = vmatpush2.xpose.msra.mxu0 0.0
      %1316 = vmatprep.subr.mxu0 0.0
      %1317 = vmatpush2.xpose.msra.mxu0 0.0
      %1318 = vmatprep.subr.mxu0 0.0
      %1319 = vmatpush2.xpose.msra.mxu0 0.0
      %1320 = vmatprep.subr.mxu0 0.0
      %1321 = vmatpush2.xpose.msra.mxu0 0.0
      %1322 = vmatprep.subr.mxu0 0.0
      %1323 = vmatpush2.xpose.msra.mxu0 0.0
      %1324 = vmatprep.subr.mxu0 0.0
      %1325 = vmatpush2.xpose.msra.mxu0 0.0
      %1326 = vmatprep.subr.mxu0 0.0
      %1327 = vmatpush2.xpose.msra.mxu0 0.0
      %1328 = vmatprep.subr.mxu0 0.0
      %1329 = vmatpush2.xpose.msra.mxu0 0.0
      %1330 = vmatprep.subr.mxu0 0.0
      %1331 = vmatpush2.xpose.msra.mxu0 0.0
      %1332 = vmatprep.subr.mxu0 0.0
      %1333 = vmatpush2.xpose.msra.mxu0 0.0
      %1334 = vmatprep.subr.mxu0 0.0
      %1335 = vmatpush2.xpose.msra.mxu0 0.0
      %1336 = vmatprep.subr.mxu0 0.0
      %1337 = vmatpush2.xpose.msra.mxu0 0.0
      %1338 = vmatprep.subr.mxu0 0.0
      %1339 = vmatpush2.xpose.msra.mxu0 0.0
      %1340 = vmatprep.subr.mxu0 0.0
      %1341 = vmatpush2.xpose.msra.mxu0 0.0
      %1342 = vmatprep.mubr.f32.mxu0 0.0
      %1343 = vmatmul.mubr.f32.gmra.mxu0 %v1274
      %v1344 = vpop.f32.mrf.mxu0
      %v1345 = vadd.f32 0.0, %v1344
      %v1346 = vpop.f32.mrf.mxu0
      %1347 = vdwg.mxu0
      %v1348 = vsel %vm797, %v1345, -inf
      %1349 = vmax.xlane.f32.xlu0 %v1348
      %v1350 = vpop.xlane.xlu0 %1349
      %v1351 = vsub.f32 %v1345, %v1350
      %v1352 = vmul.f32 %v1351, 1.442695
      %v1353 = vpow.pop %v1352
      %v1354 = vsel %vm797, %v1353, 0.0
      %1355 = vadd.xlane.f32.xlu0 %v1354
      %v1356 = vpop.xlane.xlu0 %1355
      %v1357 = vrcp.pop %v1356
      %v1358 = vmul.f32 %v1353, %v1357
      %1359 = vrot.lane.b32.xlu0 %v790, 112
      %v1360 = vpop.permute.xlu0 %1359
      %v1363 = vsel %vm797, %v1358, 0
      %1365 = vmatprep.subr.mxu0 0.0
      %1366 = vmatpush1.msra.mxu0 0.0
      %1367 = vmatprep.subr.mxu0 0.0
      %1368 = vmatpush1.msra.mxu0 0.0
      %1369 = vmatprep.subr.mxu0 0.0
      %1370 = vmatpush1.msra.mxu0 0.0
      %1371 = vmatprep.subr.mxu0 0.0
      %1372 = vmatpush1.msra.mxu0 0.0
      %1373 = vmatprep.subr.mxu0 0.0
      %1374 = vmatpush1.msra.mxu0 0.0
      %1375 = vmatprep.subr.mxu0 0.0
      %1376 = vmatpush1.msra.mxu0 0.0
      %1377 = vmatprep.subr.mxu0 0.0
      %1378 = vmatpush1.msra.mxu0 0.0
      %1379 = vmatprep.subr.mxu0 0.0
      %1380 = vmatpush1.msra.mxu0 0.0
      %1381 = vmatprep.subr.mxu0 0.0
      %1382 = vmatpush1.msra.mxu0 0.0
      %1383 = vmatprep.subr.mxu0 0.0
      %1384 = vmatpush1.msra.mxu0 0.0
      %1385 = vmatprep.subr.mxu0 0.0
      %1386 = vmatpush1.msra.mxu0 0.0
      %1387 = vmatprep.subr.mxu0 0.0
      %1388 = vmatpush1.msra.mxu0 0.0
      %1389 = vmatprep.subr.mxu0 0.0
      %1390 = vmatpush1.msra.mxu0 0.0
      %1391 = vmatprep.subr.mxu0 0.0
      %1392 = vmatpush1.msra.mxu0 0.0
      %1393 = vmatprep.subr.mxu0 0.0
      %1394 = vmatpush1.msra.mxu0 0.0
      %1395 = vmatprep.subr.mxu0 0.0
      %1396 = vmatpush1.msra.mxu0 %v1360
      %1397 = vmatprep.subr.mxu0 0.0
      %1398 = vmatpush2.msra.mxu0 0.0
      %1399 = vmatprep.subr.mxu0 0.0
      %1400 = vmatpush2.msra.mxu0 0.0
      %1401 = vmatprep.subr.mxu0 0.0
      %1402 = vmatpush2.msra.mxu0 0.0
      %1403 = vmatprep.subr.mxu0 0.0
      %1404 = vmatpush2.msra.mxu0 0.0
      %1405 = vmatprep.subr.mxu0 0.0
      %1406 = vmatpush2.msra.mxu0 0.0
      %1407 = vmatprep.subr.mxu0 0.0
      %1408 = vmatpush2.msra.mxu0 0.0
      %1409 = vmatprep.subr.mxu0 0.0
      %1410 = vmatpush2.msra.mxu0 0.0
      %1411 = vmatprep.subr.mxu0 0.0
      %1412 = vmatpush2.msra.mxu0 0.0
      %1413 = vmatprep.subr.mxu0 0.0
      %1414 = vmatpush2.msra.mxu0 0.0
      %1415 = vmatprep.subr.mxu0 0.0
      %1416 = vmatpush2.msra.mxu0 0.0
      %1417 = vmatprep.subr.mxu0 0.0
      %1418 = vmatpush2.msra.mxu0 0.0
      %1419 = vmatprep.subr.mxu0 0.0
      %1420 = vmatpush2.msra.mxu0 0.0
      %1421 = vmatprep.subr.mxu0 0.0
      %1422 = vmatpush2.msra.mxu0 0.0
      %1423 = vmatprep.subr.mxu0 0.0
      %1424 = vmatpush2.msra.mxu0 0.0
      %1425 = vmatprep.subr.mxu0 0.0
      %1426 = vmatpush2.msra.mxu0 0.0
      %1427 = vmatprep.subr.mxu0 0.0
      %1428 = vmatpush2.msra.mxu0 0.0
      %1429 = vmatprep.mubr.f32.mxu0 0.0
      %1430 = vmatmul.mubr.f32.gmra.mxu0 %v1363
      %v1431 = vpop.f32.mrf.mxu0
      %v1432 = vadd.f32 0.0, %v1431
      %v1433 = vpop.f32.mrf.mxu0
      %1434 = vdwg.mxu0
      %v1436 = vsel %vm797, %v1432, 0
      %1438 = vmatprep.subr.mxu0 0.0
      %1439 = vmatpush1.msra.mxu0 0.0
      %1440 = vmatprep.subr.mxu0 0.0
      %1441 = vmatpush1.msra.mxu0 0.0
      %1442 = vmatprep.subr.mxu0 0.0
      %1443 = vmatpush1.msra.mxu0 0.0
      %1444 = vmatprep.subr.mxu0 0.0
      %1445 = vmatpush1.msra.mxu0 0.0
      %1446 = vmatprep.subr.mxu0 0.0
      %1447 = vmatpush1.msra.mxu0 0.0
      %1448 = vmatprep.subr.mxu0 0.0
      %1449 = vmatpush1.msra.mxu0 0.0
      %1450 = vmatprep.subr.mxu0 0.0
      %1451 = vmatpush1.msra.mxu0 0.0
      %1452 = vmatprep.subr.mxu0 0.0
      %1453 = vmatpush1.msra.mxu0 0.0
      %1454 = vmatprep.subr.mxu0 0.0
      %1455 = vmatpush1.msra.mxu0 0.0
      %1456 = vmatprep.subr.mxu0 0.0
      %1457 = vmatpush1.msra.mxu0 0.0
      %1458 = vmatprep.subr.mxu0 0.0
      %1459 = vmatpush1.msra.mxu0 0.0
      %1460 = vmatprep.subr.mxu0 0.0
      %1461 = vmatpush1.msra.mxu0 0.0
      %1462 = vmatprep.subr.mxu0 0.0
      %1463 = vmatpush1.msra.mxu0 0.0
      %1464 = vmatprep.subr.mxu0 0.0
      %1465 = vmatpush1.msra.mxu0 0.0
      %1466 = vmatprep.subr.mxu0 0.0
      %1467 = vmatpush1.msra.mxu0 0.0
      %1468 = vmatprep.subr.mxu0 0.0
      %1469 = vmatpush1.msra.mxu0 %v795
      %1470 = vmatprep.subr.mxu0 0.0
      %1471 = vmatpush2.msra.mxu0 0.0
      %1472 = vmatprep.subr.mxu0 0.0
      %1473 = vmatpush2.msra.mxu0 0.0
      %1474 = vmatprep.subr.mxu0 0.0
      %1475 = vmatpush2.msra.mxu0 0.0
      %1476 = vmatprep.subr.mxu0 0.0
      %1477 = vmatpush2.msra.mxu0 0.0
      %1478 = vmatprep.subr.mxu0 0.0
      %1479 = vmatpush2.msra.mxu0 0.0
      %1480 = vmatprep.subr.mxu0 0.0
      %1481 = vmatpush2.msra.mxu0 0.0
      %1482 = vmatprep.subr.mxu0 0.0
      %1483 = vmatpush2.msra.mxu0 0.0
      %1484 = vmatprep.subr.mxu0 0.0
      %1485 = vmatpush2.msra.mxu0 0.0
      %1486 = vmatprep.subr.mxu0 0.0
      %1487 = vmatpush2.msra.mxu0 0.0
      %1488 = vmatprep.subr.mxu0 0.0
      %1489 = vmatpush2.msra.mxu0 0.0
      %1490 = vmatprep.subr.mxu0 0.0
      %1491 = vmatpush2.msra.mxu0 0.0
      %1492 = vmatprep.subr.mxu0 0.0
      %1493 = vmatpush2.msra.mxu0 0.0
      %1494 = vmatprep.subr.mxu0 0.0
      %1495 = vmatpush2.msra.mxu0 0.0
      %1496 = vmatprep.subr.mxu0 0.0
      %1497 = vmatpush2.msra.mxu0 0.0
      %1498 = vmatprep.subr.mxu0 0.0
      %1499 = vmatpush2.msra.mxu0 0.0
      %1500 = vmatprep.subr.mxu0 0.0
      %1501 = vmatpush2.msra.mxu0 0.0
      %1502 = vmatprep.mubr.f32.mxu0 0.0
      %1503 = vmatmul.mubr.f32.gmra.mxu0 %v1436
      %v1504 = vpop.f32.mrf.mxu0
      %v1505 = vadd.f32 0.0, %v1504
      %v1506 = vpop.f32.mrf.mxu0
      %1507 = vdwg.mxu0
      %v1508 = vadd.f32 %v1267, %v1505
      %1509 = vrot.lane.b32.xlu0 %v630, 104
      %v1510 = vpop.permute.xlu0 %1509
      %1511 = vrot.lane.b32.xlu0 %v709, 104
      %v1512 = vpop.permute.xlu0 %1511
      %v1513 = vsel %vm797, %v1510, 0
      %v1515 = vsel %vm797, %v1512, 0
      %1517 = vmatprep.subr.mxu0 0.0
      %1518 = vmatpush1.xpose.msra.mxu0 0.0
      %1519 = vmatprep.subr.mxu0 0.0
      %1520 = vmatpush1.xpose.msra.mxu0 0.0
      %1521 = vmatprep.subr.mxu0 0.0
      %1522 = vmatpush1.xpose.msra.mxu0 0.0
      %1523 = vmatprep.subr.mxu0 0.0
      %1524 = vmatpush1.xpose.msra.mxu0 0.0
      %1525 = vmatprep.subr.mxu0 0.0
      %1526 = vmatpush1.xpose.msra.mxu0 0.0
      %1527 = vmatprep.subr.mxu0 0.0
      %1528 = vmatpush1.xpose.msra.mxu0 0.0
      %1529 = vmatprep.subr.mxu0 0.0
      %1530 = vmatpush1.xpose.msra.mxu0 0.0
      %1531 = vmatprep.subr.mxu0 0.0
      %1532 = vmatpush1.xpose.msra.mxu0 0.0
      %1533 = vmatprep.subr.mxu0 0.0
      %1534 = vmatpush1.xpose.msra.mxu0 0.0
      %1535 = vmatprep.subr.mxu0 0.0
      %1536 = vmatpush1.xpose.msra.mxu0 0.0
      %1537 = vmatprep.subr.mxu0 0.0
      %1538 = vmatpush1.xpose.msra.mxu0 0.0
      %1539 = vmatprep.subr.mxu0 0.0
      %1540 = vmatpush1.xpose.msra.mxu0 0.0
      %1541 = vmatprep.subr.mxu0 0.0
      %1542 = vmatpush1.xpose.msra.mxu0 0.0
      %1543 = vmatprep.subr.mxu0 0.0
      %1544 = vmatpush1.xpose.msra.mxu0 0.0
      %1545 = vmatprep.subr.mxu0 0.0
      %1546 = vmatpush1.xpose.msra.mxu0 0.0
      %1547 = vmatprep.subr.mxu0 0.0
      %1548 = vmatpush1.xpose.msra.mxu0 %v1515
      %1549 = vmatprep.subr.mxu0 0.0
      %1550 = vmatpush2.xpose.msra.mxu0 0.0
      %1551 = vmatprep.subr.mxu0 0.0
      %1552 = vmatpush2.xpose.msra.mxu0 0.0
      %1553 = vmatprep.subr.mxu0 0.0
      %1554 = vmatpush2.xpose.msra.mxu0 0.0
      %1555 = vmatprep.subr.mxu0 0.0
      %1556 = vmatpush2.xpose.msra.mxu0 0.0
      %1557 = vmatprep.subr.mxu0 0.0
      %1558 = vmatpush2.xpose.msra.mxu0 0.0
      %1559 = vmatprep.subr.mxu0 0.0
      %1560 = vmatpush2.xpose.msra.mxu0 0.0
      %1561 = vmatprep.subr.mxu0 0.0
      %1562 = vmatpush2.xpose.msra.mxu0 0.0
      %1563 = vmatprep.subr.mxu0 0.0
      %1564 = vmatpush2.xpose.msra.mxu0 0.0
      %1565 = vmatprep.subr.mxu0 0.0
      %1566 = vmatpush2.xpose.msra.mxu0 0.0
      %1567 = vmatprep.subr.mxu0 0.0
      %1568 = vmatpush2.xpose.msra.mxu0 0.0
      %1569 = vmatprep.subr.mxu0 0.0
      %1570 = vmatpush2.xpose.msra.mxu0 0.0
      %1571 = vmatprep.subr.mxu0 0.0
      %1572 = vmatpush2.xpose.msra.mxu0 0.0
      %1573 = vmatprep.subr.mxu0 0.0
      %1574 = vmatpush2.xpose.msra.mxu0 0.0
      %1575 = vmatprep.subr.mxu0 0.0
      %1576 = vmatpush2.xpose.msra.mxu0 0.0
      %1577 = vmatprep.subr.mxu0 0.0
      %1578 = vmatpush2.xpose.msra.mxu0 0.0
      %1579 = vmatprep.subr.mxu0 0.0
      %1580 = vmatpush2.xpose.msra.mxu0 0.0
      %1581 = vmatprep.mubr.f32.mxu0 0.0
      %1582 = vmatmul.mubr.f32.gmra.mxu0 %v1513
      %v1583 = vpop.f32.mrf.mxu0
      %v1584 = vadd.f32 0.0, %v1583
      %v1585 = vpop.f32.mrf.mxu0
      %1586 = vdwg.mxu0
      %v1587 = vsel %vm797, %v1584, -inf
      %1588 = vmax.xlane.f32.xlu0 %v1587
      %v1589 = vpop.xlane.xlu0 %1588
      %v1590 = vsub.f32 %v1584, %v1589
      %v1591 = vmul.f32 %v1590, 1.442695
      %v1592 = vpow.pop %v1591
      %v1593 = vsel %vm797, %v1592, 0.0
      %1594 = vadd.xlane.f32.xlu0 %v1593
      %v1595 = vpop.xlane.xlu0 %1594
      %v1596 = vrcp.pop %v1595
      %v1597 = vmul.f32 %v1592, %v1596
      %1598 = vrot.lane.b32.xlu0 %v790, 104
      %v1599 = vpop.permute.xlu0 %1598
      %v1602 = vsel %vm797, %v1597, 0
      %1604 = vmatprep.subr.mxu0 0.0
      %1605 = vmatpush1.msra.mxu0 0.0
      %1606 = vmatprep.subr.mxu0 0.0
      %1607 = vmatpush1.msra.mxu0 0.0
      %1608 = vmatprep.subr.mxu0 0.0
      %1609 = vmatpush1.msra.mxu0 0.0
      %1610 = vmatprep.subr.mxu0 0.0
      %1611 = vmatpush1.msra.mxu0 0.0
      %1612 = vmatprep.subr.mxu0 0.0
      %1613 = vmatpush1.msra.mxu0 0.0
      %1614 = vmatprep.subr.mxu0 0.0
      %1615 = vmatpush1.msra.mxu0 0.0
      %1616 = vmatprep.subr.mxu0 0.0
      %1617 = vmatpush1.msra.mxu0 0.0
      %1618 = vmatprep.subr.mxu0 0.0
      %1619 = vmatpush1.msra.mxu0 0.0
      %1620 = vmatprep.subr.mxu0 0.0
      %1621 = vmatpush1.msra.mxu0 0.0
      %1622 = vmatprep.subr.mxu0 0.0
      %1623 = vmatpush1.msra.mxu0 0.0
      %1624 = vmatprep.subr.mxu0 0.0
      %1625 = vmatpush1.msra.mxu0 0.0
      %1626 = vmatprep.subr.mxu0 0.0
      %1627 = vmatpush1.msra.mxu0 0.0
      %1628 = vmatprep.subr.mxu0 0.0
      %1629 = vmatpush1.msra.mxu0 0.0
      %1630 = vmatprep.subr.mxu0 0.0
      %1631 = vmatpush1.msra.mxu0 0.0
      %1632 = vmatprep.subr.mxu0 0.0
      %1633 = vmatpush1.msra.mxu0 0.0
      %1634 = vmatprep.subr.mxu0 0.0
      %1635 = vmatpush1.msra.mxu0 %v1599
      %1636 = vmatprep.subr.mxu0 0.0
      %1637 = vmatpush2.msra.mxu0 0.0
      %1638 = vmatprep.subr.mxu0 0.0
      %1639 = vmatpush2.msra.mxu0 0.0
      %1640 = vmatprep.subr.mxu0 0.0
      %1641 = vmatpush2.msra.mxu0 0.0
      %1642 = vmatprep.subr.mxu0 0.0
      %1643 = vmatpush2.msra.mxu0 0.0
      %1644 = vmatprep.subr.mxu0 0.0
      %1645 = vmatpush2.msra.mxu0 0.0
      %1646 = vmatprep.subr.mxu0 0.0
      %1647 = vmatpush2.msra.mxu0 0.0
      %1648 = vmatprep.subr.mxu0 0.0
      %1649 = vmatpush2.msra.mxu0 0.0
      %1650 = vmatprep.subr.mxu0 0.0
      %1651 = vmatpush2.msra.mxu0 0.0
      %1652 = vmatprep.subr.mxu0 0.0
      %1653 = vmatpush2.msra.mxu0 0.0
      %1654 = vmatprep.subr.mxu0 0.0
      %1655 = vmatpush2.msra.mxu0 0.0
      %1656 = vmatprep.subr.mxu0 0.0
      %1657 = vmatpush2.msra.mxu0 0.0
      %1658 = vmatprep.subr.mxu0 0.0
      %1659 = vmatpush2.msra.mxu0 0.0
      %1660 = vmatprep.subr.mxu0 0.0
      %1661 = vmatpush2.msra.mxu0 0.0
      %1662 = vmatprep.subr.mxu0 0.0
      %1663 = vmatpush2.msra.mxu0 0.0
      %1664 = vmatprep.subr.mxu0 0.0
      %1665 = vmatpush2.msra.mxu0 0.0
      %1666 = vmatprep.subr.mxu0 0.0
      %1667 = vmatpush2.msra.mxu0 0.0
      %1668 = vmatprep.mubr.f32.mxu0 0.0
      %1669 = vmatmul.mubr.f32.gmra.mxu0 %v1602
      %v1670 = vpop.f32.mrf.mxu0
      %v1671 = vadd.f32 0.0, %v1670
      %v1672 = vpop.f32.mrf.mxu0
      %1673 = vdwg.mxu0
      %v1675 = vsel %vm797, %v1671, 0
      %1677 = vmatprep.subr.mxu0 0.0
      %1678 = vmatpush1.msra.mxu0 0.0
      %1679 = vmatprep.subr.mxu0 0.0
      %1680 = vmatpush1.msra.mxu0 0.0
      %1681 = vmatprep.subr.mxu0 0.0
      %1682 = vmatpush1.msra.mxu0 0.0
      %1683 = vmatprep.subr.mxu0 0.0
      %1684 = vmatpush1.msra.mxu0 0.0
      %1685 = vmatprep.subr.mxu0 0.0
      %1686 = vmatpush1.msra.mxu0 0.0
      %1687 = vmatprep.subr.mxu0 0.0
      %1688 = vmatpush1.msra.mxu0 0.0
      %1689 = vmatprep.subr.mxu0 0.0
      %1690 = vmatpush1.msra.mxu0 0.0
      %1691 = vmatprep.subr.mxu0 0.0
      %1692 = vmatpush1.msra.mxu0 0.0
      %1693 = vmatprep.subr.mxu0 0.0
      %1694 = vmatpush1.msra.mxu0 0.0
      %1695 = vmatprep.subr.mxu0 0.0
      %1696 = vmatpush1.msra.mxu0 0.0
      %1697 = vmatprep.subr.mxu0 0.0
      %1698 = vmatpush1.msra.mxu0 0.0
      %1699 = vmatprep.subr.mxu0 0.0
      %1700 = vmatpush1.msra.mxu0 0.0
      %1701 = vmatprep.subr.mxu0 0.0
      %1702 = vmatpush1.msra.mxu0 0.0
      %1703 = vmatprep.subr.mxu0 0.0
      %1704 = vmatpush1.msra.mxu0 0.0
      %1705 = vmatprep.subr.mxu0 0.0
      %1706 = vmatpush1.msra.mxu0 0.0
      %1707 = vmatprep.subr.mxu0 0.0
      %1708 = vmatpush1.msra.mxu0 %v796
      %1709 = vmatprep.subr.mxu0 0.0
      %1710 = vmatpush2.msra.mxu0 0.0
      %1711 = vmatprep.subr.mxu0 0.0
      %1712 = vmatpush2.msra.mxu0 0.0
      %1713 = vmatprep.subr.mxu0 0.0
      %1714 = vmatpush2.msra.mxu0 0.0
      %1715 = vmatprep.subr.mxu0 0.0
      %1716 = vmatpush2.msra.mxu0 0.0
      %1717 = vmatprep.subr.mxu0 0.0
      %1718 = vmatpush2.msra.mxu0 0.0
      %1719 = vmatprep.subr.mxu0 0.0
      %1720 = vmatpush2.msra.mxu0 0.0
      %1721 = vmatprep.subr.mxu0 0.0
      %1722 = vmatpush2.msra.mxu0 0.0
      %1723 = vmatprep.subr.mxu0 0.0
      %1724 = vmatpush2.msra.mxu0 0.0
      %1725 = vmatprep.subr.mxu0 0.0
      %1726 = vmatpush2.msra.mxu0 0.0
      %1727 = vmatprep.subr.mxu0 0.0
      %1728 = vmatpush2.msra.mxu0 0.0
      %1729 = vmatprep.subr.mxu0 0.0
      %1730 = vmatpush2.msra.mxu0 0.0
      %1731 = vmatprep.subr.mxu0 0.0
      %1732 = vmatpush2.msra.mxu0 0.0
      %1733 = vmatprep.subr.mxu0 0.0
      %1734 = vmatpush2.msra.mxu0 0.0
      %1735 = vmatprep.subr.mxu0 0.0
      %1736 = vmatpush2.msra.mxu0 0.0
      %1737 = vmatprep.subr.mxu0 0.0
      %1738 = vmatpush2.msra.mxu0 0.0
      %1739 = vmatprep.subr.mxu0 0.0
      %1740 = vmatpush2.msra.mxu0 0.0
      %1741 = vmatprep.mubr.f32.mxu0 0.0
      %1742 = vmatmul.mubr.f32.gmra.mxu0 %v1675
      %v1743 = vpop.f32.mrf.mxu0
      %v1744 = vadd.f32 0.0, %v1743
      %v1745 = vpop.f32.mrf.mxu0
      %1746 = vdwg.mxu0
      %v1747 = vadd.f32 %v1508, %v1744
      %v1748 = vld [vmem:[%s8] sm:$0x1]
      %v1750 = vlaneseq
      %v1751 = vshrl.u32 %v1750, 7
      %v1752 = vsub.s32 0, %v1751
      %v1753 = vrot.slane %v1748, %v1752
      %v1755 = vadd.f32 %v1747, %v1753
      %v1756 = vadd.f32 %v544, %v1755
      %v1757 = vsel %vm556, %v1756, 0.0
      %1758 = vadd.xlane.f32.xlu0 %v1757
      %v1759 = vpop.xlane.xlu0 %1758
      %v1760 = vrcp.pop 32.0
      %v1761 = vmul.f32 %v1759, %v1760
      %v1762 = vsub.f32 %v1756, %v1761
      %v1763 = vmul.f32 %v1762, %v1762
      %v1764 = vsel %vm556, %v1763, 0.0
      %1765 = vadd.xlane.f32.xlu0 %v1764
      %v1766 = vpop.xlane.xlu0 %1765
      %v1767 = vmul.f32 %v1766, %v1760
      %v1768 = vadd.f32 %v1767, 1e-05
      %v1769 = vrsqrt.pop %v1768
      %v1770 = vmul.f32 %v1762, %v1769
      %v1771 = vld [vmem:[%s13] sm:$0x1]
      %v1773 = vlaneseq
      %v1774 = vshrl.u32 %v1773, 7
      %v1775 = vsub.s32 0, %v1774
      %v1776 = vrot.slane %v1771, %v1775
      %v1778 = vmul.f32 %v1770, %v1776
      %v1779 = vld [vmem:[%s14] sm:$0x1]
      %v1781 = vlaneseq
      %v1782 = vshrl.u32 %v1781, 7
      %v1783 = vsub.s32 0, %v1782
      %v1784 = vrot.slane %v1779, %v1783
      %v1786 = vadd.f32 %v1778, %v1784
      %v1787 = vld [vmem:[%s9] sm:$0xff]
      %v1788 = vld [vmem:[%s9 + $0x8] sm:$0xff]
      %v1789 = vld [vmem:[%s9 + $0x10] sm:$0xff]
      %v1790 = vld [vmem:[%s9 + $0x18] sm:$0xff]
      %v1791 = vld [vmem:[%s10] sm:$0x1]
      %v1793 = vlaneseq
      %v1794 = vshrl.u32 %v1793, 7
      %v1795 = vsub.s32 0, %v1794
      %v1796 = vrot.slane %v1791, %v1795
      %v1799 = vsel %vm556, %v1786, 0
      %1801 = vmatprep.subr.mxu0 0.0
      %1802 = vmatpush1.msra.mxu0 0.0
      %1803 = vmatprep.subr.mxu0 0.0
      %1804 = vmatpush1.msra.mxu0 0.0
      %1805 = vmatprep.subr.mxu0 0.0
      %1806 = vmatpush1.msra.mxu0 0.0
      %1807 = vmatprep.subr.mxu0 0.0
      %1808 = vmatpush1.msra.mxu0 0.0
      %1809 = vmatprep.subr.mxu0 0.0
      %1810 = vmatpush1.msra.mxu0 0.0
      %1811 = vmatprep.subr.mxu0 0.0
      %1812 = vmatpush1.msra.mxu0 0.0
      %1813 = vmatprep.subr.mxu0 0.0
      %1814 = vmatpush1.msra.mxu0 0.0
      %1815 = vmatprep.subr.mxu0 0.0
      %1816 = vmatpush1.msra.mxu0 0.0
      %1817 = vmatprep.subr.mxu0 0.0
      %1818 = vmatpush1.msra.mxu0 0.0
      %1819 = vmatprep.subr.mxu0 0.0
      %1820 = vmatpush1.msra.mxu0 0.0
      %1821 = vmatprep.subr.mxu0 0.0
      %1822 = vmatpush1.msra.mxu0 0.0
      %1823 = vmatprep.subr.mxu0 0.0
      %1824 = vmatpush1.msra.mxu0 0.0
      %1825 = vmatprep.subr.mxu0 0.0
      %1826 = vmatpush1.msra.mxu0 %v1790
      %1827 = vmatprep.subr.mxu0 0.0
      %1828 = vmatpush1.msra.mxu0 %v1789
      %1829 = vmatprep.subr.mxu0 0.0
      %1830 = vmatpush1.msra.mxu0 %v1788
      %1831 = vmatprep.subr.mxu0 0.0
      %1832 = vmatpush1.msra.mxu0 %v1787
      %1833 = vmatprep.subr.mxu0 0.0
      %1834 = vmatpush2.msra.mxu0 0.0
      %1835 = vmatprep.subr.mxu0 0.0
      %1836 = vmatpush2.msra.mxu0 0.0
      %1837 = vmatprep.subr.mxu0 0.0
      %1838 = vmatpush2.msra.mxu0 0.0
      %1839 = vmatprep.subr.mxu0 0.0
      %1840 = vmatpush2.msra.mxu0 0.0
      %1841 = vmatprep.subr.mxu0 0.0
      %1842 = vmatpush2.msra.mxu0 0.0
      %1843 = vmatprep.subr.mxu0 0.0
      %1844 = vmatpush2.msra.mxu0 0.0
      %1845 = vmatprep.subr.mxu0 0.0
      %1846 = vmatpush2.msra.mxu0 0.0
      %1847 = vmatprep.subr.mxu0 0.0
      %1848 = vmatpush2.msra.mxu0 0.0
      %1849 = vmatprep.subr.mxu0 0.0
      %1850 = vmatpush2.msra.mxu0 0.0
      %1851 = vmatprep.subr.mxu0 0.0
      %1852 = vmatpush2.msra.mxu0 0.0
      %1853 = vmatprep.subr.mxu0 0.0
      %1854 = vmatpush2.msra.mxu0 0.0
      %1855 = vmatprep.subr.mxu0 0.0
      %1856 = vmatpush2.msra.mxu0 0.0
      %1857 = vmatprep.subr.mxu0 0.0
      %1858 = vmatpush2.msra.mxu0 0.0
      %1859 = vmatprep.subr.mxu0 0.0
      %1860 = vmatpush2.msra.mxu0 0.0
      %1861 = vmatprep.subr.mxu0 0.0
      %1862 = vmatpush2.msra.mxu0 0.0
      %1863 = vmatprep.subr.mxu0 0.0
      %1864 = vmatpush2.msra.mxu0 0.0
      %1865 = vmatprep.mubr.f32.mxu0 0.0
      %1866 = vmatmul.mubr.f32.gmra.mxu0 %v1799
      %v1867 = vpop.f32.mrf.mxu0
      %v1868 = vadd.f32 %v1796, %v1867
      %v1869 = vpop.f32.mrf.mxu0
      %1870 = vdwg.mxu0
      %v1871 = vmax.f32 %v1868, 0.0
      %v1872 = vld [vmem:[%s11] sm:$0xff]
      %v1873 = vld [vmem:[%s11 + $0x8] sm:$0xff]
      %v1874 = vld [vmem:[%s11 + $0x10] sm:$0xff]
      %v1875 = vld [vmem:[%s11 + $0x18] sm:$0xff]
      %v1876 = vld [vmem:[%s11 + $0x20] sm:$0xff]
      %v1877 = vld [vmem:[%s11 + $0x28] sm:$0xff]
      %v1878 = vld [vmem:[%s11 + $0x30] sm:$0xff]
      %v1879 = vld [vmem:[%s11 + $0x38] sm:$0xff]
      %v1880 = vld [vmem:[%s12] sm:$0x1]
      %v1882 = vlaneseq
      %v1883 = vshrl.u32 %v1882, 7
      %v1884 = vsub.s32 0, %v1883
      %v1885 = vrot.slane %v1880, %v1884
      %vm1887 = vcmask 523264
      %v1889 = vsel %vm1887, %v1871, 0
      %1891 = vmatprep.subr.mxu0 0.0
      %1892 = vmatpush1.msra.mxu0 0.0
      %1893 = vmatprep.subr.mxu0 0.0
      %1894 = vmatpush1.msra.mxu0 0.0
      %1895 = vmatprep.subr.mxu0 0.0
      %1896 = vmatpush1.msra.mxu0 0.0
      %1897 = vmatprep.subr.mxu0 0.0
      %1898 = vmatpush1.msra.mxu0 0.0
      %1899 = vmatprep.subr.mxu0 0.0
      %1900 = vmatpush1.msra.mxu0 0.0
      %1901 = vmatprep.subr.mxu0 0.0
      %1902 = vmatpush1.msra.mxu0 0.0
      %1903 = vmatprep.subr.mxu0 0.0
      %1904 = vmatpush1.msra.mxu0 0.0
      %1905 = vmatprep.subr.mxu0 0.0
      %1906 = vmatpush1.msra.mxu0 0.0
      %1907 = vmatprep.subr.mxu0 0.0
      %1908 = vmatpush1.msra.mxu0 %v1879
      %1909 = vmatprep.subr.mxu0 0.0
      %1910 = vmatpush1.msra.mxu0 %v1878
      %1911 = vmatprep.subr.mxu0 0.0
      %1912 = vmatpush1.msra.mxu0 %v1877
      %1913 = vmatprep.subr.mxu0 0.0
      %1914 = vmatpush1.msra.mxu0 %v1876
      %1915 = vmatprep.subr.mxu0 0.0
      %1916 = vmatpush1.msra.mxu0 %v1875
      %1917 = vmatprep.subr.mxu0 0.0
      %1918 = vmatpush1.msra.mxu0 %v1874
      %1919 = vmatprep.subr.mxu0 0.0
      %1920 = vmatpush1.msra.mxu0 %v1873
      %1921 = vmatprep.subr.mxu0 0.0
      %1922 = vmatpush1.msra.mxu0 %v1872
      %1923 = vmatprep.subr.mxu0 0.0
      %1924 = vmatpush2.msra.mxu0 0.0
      %1925 = vmatprep.subr.mxu0 0.0
      %1926 = vmatpush2.msra.mxu0 0.0
      %1927 = vmatprep.subr.mxu0 0.0
      %1928 = vmatpush2.msra.mxu0 0.0
      %1929 = vmatprep.subr.mxu0 0.0
      %1930 = vmatpush2.msra.mxu0 0.0
      %1931 = vmatprep.subr.mxu0 0.0
      %1932 = vmatpush2.msra.mxu0 0.0
      %1933 = vmatprep.subr.mxu0 0.0
      %1934 = vmatpush2.msra.mxu0 0.0
      %1935 = vmatprep.subr.mxu0 0.0
      %1936 = vmatpush2.msra.mxu0 0.0
      %1937 = vmatprep.subr.mxu0 0.0
      %1938 = vmatpush2.msra.mxu0 0.0
      %1939 = vmatprep.subr.mxu0 0.0
      %1940 = vmatpush2.msra.mxu0 0.0
      %1941 = vmatprep.subr.mxu0 0.0
      %1942 = vmatpush2.msra.mxu0 0.0
      %1943 = vmatprep.subr.mxu0 0.0
      %1944 = vmatpush2.msra.mxu0 0.0
      %1945 = vmatprep.subr.mxu0 0.0
      %1946 = vmatpush2.msra.mxu0 0.0
      %1947 = vmatprep.subr.mxu0 0.0
      %1948 = vmatpush2.msra.mxu0 0.0
      %1949 = vmatprep.subr.mxu0 0.0
      %1950 = vmatpush2.msra.mxu0 0.0
      %1951 = vmatprep.subr.mxu0 0.0
      %1952 = vmatpush2.msra.mxu0 0.0
      %1953 = vmatprep.subr.mxu0 0.0
      %1954 = vmatpush2.msra.mxu0 0.0
      %1955 = vmatprep.mubr.f32.mxu0 0.0
      %1956 = vmatmul.mubr.f32.gmra.mxu0 %v1889
      %v1957 = vpop.f32.mrf.mxu0
      %v1958 = vadd.f32 %v1885, %v1957
      %v1959 = vpop.f32.mrf.mxu0
      %1960 = vdwg.mxu0
      %v1961 = vadd.f32 %v1786, %v1958
      %v1962 = vsel %vm556, %v1961, 0.0
      %1963 = vadd.xlane.f32.xlu0 %v1962
      %v1964 = vpop.xlane.xlu0 %1963
      %v1965 = vmul.f32 %v1964, %v1760
      %v1966 = vsub.f32 %v1961, %v1965
      %v1967 = vmul.f32 %v1966, %v1966
      %v1968 = vsel %vm556, %v1967, 0.0
      %1969 = vadd.xlane.f32.xlu0 %v1968
      %v1970 = vpop.xlane.xlu0 %1969
      %v1971 = vmul.f32 %v1970, %v1760
      %v1972 = vadd.f32 %v1971, 1e-05
      %v1973 = vrsqrt.pop %v1972
      %v1974 = vmul.f32 %v1966, %v1973
      %v1975 = vld [vmem:[%s15] sm:$0x1]
      %v1977 = vlaneseq
      %v1978 = vshrl.u32 %v1977, 7
      %v1979 = vsub.s32 0, %v1978
      %v1980 = vrot.slane %v1975, %v1979
      %v1982 = vmul.f32 %v1974, %v1980
      %v1983 = vld [vmem:[%s16] sm:$0x1]
      %v1985 = vlaneseq
      %v1986 = vshrl.u32 %v1985, 7
      %v1987 = vsub.s32 0, %v1986
      %v1988 = vrot.slane %v1983, %v1987
      %v1990 = vadd.f32 %v1982, %v1988
      %1991 = vst.msk [vmem:[%s543] sm:$0xff] %vm556, %v1990
      %p1992 = scmp.lt.s32.totalorder %s28, 1
      %s1993 = scalar_select %p1992, %s28, 1
      %s1994 = smul.addr %s1993, 8
      %s1995 = scalar_lea.vmem %s17, %s1994
      // Predicated region
      $region89: #{transformer_encoder_layer.1} parent=87 // pred_check
        %p1996 = pneg %p408
      $region90: #{transformer_encoder_layer.1} parent=87 // pred_check_branch
        %1998 = sbr.rel (%p1996) target = $region92
      $region91: #{transformer_encoder_layer.1} parent=87 // pred_region
        _
      $region92: #{transformer_encoder_layer.1} parent=87 // pred_fallthru
        _
    $region88: #{transformer_encoder_layer.1} parent=5 // pred_fallthru
      _
    %p1999 = scmp.le.s32.totalorder 2, %s23
    // Predicated region
    $region93: #{transformer_encoder_layer.1} parent=5 // pred_check
      %p2000 = pneg %p1999
    $region94: #{transformer_encoder_layer.1} parent=5 // pred_check_branch
      %2002 = sbr.rel (%p2000) target = $region96
    $region95: #{transformer_encoder_layer.1} parent=5 // pred_region
      %s2003 = ssub.s32 %s23, 2
      // Predicated region
      $region97: #{transformer_encoder_layer.1} parent=95 // pred_check
        %p2004 = pneg %p414
      $region98: #{transformer_encoder_layer.1} parent=95 // pred_check_branch
        %2006 = sbr.rel (%p2004) target = $region100
      $region99: #{transformer_encoder_layer.1} parent=95 // pred_region
        %p2007 = scmp.lt.s32.totalorder %s29, 1
        %s2008 = scalar_select %p2007, %s29, 1
        %s2009 = smul.addr %s2008, 8
        %s2010 = scalar_lea.vmem %s17, %s2009
      $region100: #{transformer_encoder_layer.1} parent=95 // pred_fallthru
        _
    $region96: #{transformer_encoder_layer.1} parent=5 // pred_fallthru
      _
  $region6: #{transformer_encoder_layer.1} parent=0 // loop_footer
    %s27 = sadd.s32 1, %s23
  $region7: #{transformer_encoder_layer.1} parent=0 // loop_footer_branch
    %22 = sbr.rel target = $region3
  $region8: #{transformer_encoder_layer.1} parent=0 // loop_exit
    _

</llo_original>
